<compile_context>
chip_gen: v6e
topology: v6e:2x2x1
jax: 0.10.0
libtpu: 0.0.40
codegen_flags: <defaults>
</compile_context>

<pallas_src>
import functools

import jax
import jax.numpy as jnp
from jax.experimental import pallas as pl
from jax.experimental.pallas import tpu as pltpu


def _rup(a, m):
    return -(-a // m) * m


def _svfe_kernel(x_ref, w1_ref, b1_ref, w2a_ref, w2b_ref, b2_ref,
                 w3a_ref, w3b_ref, b3_ref, o_ref, *, t_valid):
    """Fused SVFE over a tile of KB voxels.

    x_ref : (KB, T, cin) VMEM f32        o_ref : (KB, 128) VMEM f32
    w1    : (cin, 16)   b1 : (1, 16)     -- VFE(7,32).fcn, BN-folded
    w2a/b : (16, 64)    b2 : (1, 64)     -- VFE(32,128).fcn, split pwf/laf halves
    w3a/b : (64, 128)   b3 : (1, 128)    -- final FCN(128,128), split halves
    """
    KB, T, cin = x_ref.shape
    u1 = w1_ref.shape[1]
    u2 = w2a_ref.shape[1]
    c3 = w3a_ref.shape[1]

    x = x_ref[...]                                            # (KB, T, cin) f32

    # Point-presence mask, same rule as torch.ne(torch.max(x, 2)[0], 0).
    mask = (jnp.max(x, axis=2, keepdims=True) != 0).astype(jnp.float32)

    # Max over T excluding wrapper-padded rows. Every maxed tensor is
    # post-ReLU (>= 0), so substituting 0 for padded rows == excluding them.
    if t_valid == T:
        def vmax(a):
            return jnp.max(a, axis=1, keepdims=True)
    else:
        tvalid = jax.lax.broadcasted_iota(jnp.int32, (T, 1), 0) < t_valid

        def vmax(a):
            return jnp.max(jnp.where(tvalid, a, 0.0), axis=1, keepdims=True)

    def mm(a, w_ref):
        w = w_ref[...]
        # Weights carry the matmul operand dtype chosen by the wrapper
        # (bf16 on v6e/v7x, f32 otherwise); accumulate in f32 either way.
        return jnp.dot(a.astype(w.dtype), w, preferred_element_type=jnp.float32)

    # ---- VFE-1 : relu(BN(Linear(cin -> u1))) per point ---------------------
    h1 = mm(x.reshape(KB * T, cin), w1_ref) + b1_ref[...]
    pwf1 = jnp.maximum(h1, 0.0).reshape(KB, T, u1)
    laf1 = vmax(pwf1)                                         # (KB, 1, u1)

    # ---- VFE-2 : h2 = mask * (pwf1 @ W2a + laf1 @ W2b) + b2 ----------------
    # laf contribution computed per voxel (T-fold fewer MXU rows); the
    # per-point mask (a scalar per row) is factored out of both GEMMs.
    s1 = mm(laf1.reshape(KB, u1), w2b_ref)                    # (KB, u2)
    h2 = mm(pwf1.reshape(KB * T, u1), w2a_ref).reshape(KB, T, u2)
    h2 = mask * (h2 + s1[:, None, :]) + b2_ref[...]
    pwf2 = jnp.maximum(h2, 0.0)
    laf2 = vmax(pwf2)                                         # (KB, 1, u2)

    # ---- final FCN : h3 = mask * (pwf2 @ W3a + laf2 @ W3b) + b3 ------------
    s2 = mm(laf2.reshape(KB, u2), w3b_ref)                    # (KB, c3)
    h3 = mm(pwf2.reshape(KB * T, u2), w3a_ref).reshape(KB, T, c3)
    h3 = mask * (h3 + s2[:, None, :]) + b3_ref[...]
    pwf3 = jnp.maximum(h3, 0.0)

    # ---- voxel feature: max over the T points (lane-dense 128-wide store) --
    o_ref[...] = vmax(pwf3).reshape(KB, c3).astype(o_ref.dtype)


def _tpu_kind():
    try:
        return jax.devices()[0].device_kind.lower()
    except Exception:
        return ""


def svfe_forward(x, params, *, voxel_block=None, matmul_dtype=None):
    """x: (K, T, 7) f32, params: BN-folded weights. Returns (K, 128) f32."""
    w1, b1, w2, b2, w3, b3 = params
    K, T, cin = x.shape
    u1 = w1.shape[1]
    u2 = w2.shape[1]
    c3 = w3.shape[1]

    kind = _tpu_kind()

    # bf16 matmul operands (f32 accumulation) on bf16-native MXUs (v6e/v7x);
    # exact f32 elsewhere. Elementwise / relu / max math is f32 in both modes.
    if matmul_dtype is None:
        matmul_dtype = (jnp.bfloat16 if ("v6" in kind or "v7" in kind)
                        else jnp.float32)

    # Split the VFE weights into point-wise (a) and aggregated (b) halves so
    # the lane-axis concat([pwf, laf]) never materializes.
    w2a, w2b = w2[:u1, :], w2[u1:, :]
    w3a, w3b = w3[:u2, :], w3[u2:, :]
    w1m, w2am, w2bm, w3am, w3bm = (w.astype(matmul_dtype)
                                   for w in (w1, w2a, w2b, w3a, w3b))

    # Pad T to a multiple of 8 (f32 sublane) so (KB,T,u)<->(KB*T,u) reshapes
    # stay layout-preserving; padded rows are excluded from every max over T.
    # (bf16 is only used as a matmul-operand cast after the reshape, so the
    # f32 sublane multiple of 8 is the relevant one.)
    t_pad = _rup(T, 8)
    if t_pad != T:
        x = jnp.pad(x, ((0, 0), (0, t_pad - T), (0, 0)))

    # ---- VMEM-aware voxel tile size ----------------------------------------
    # The (vb, t_pad, 7) input block is lane-padded 7 -> 128 in VMEM, and the
    # fused f32 temporaries (mask, pwf1/2/3, cast operands, ...) are each
    # <= 128 lanes wide; budget ~8 lane-padded (t_pad, 128) f32 slabs per
    # voxel (covers the x double buffer + live temporaries + headroom).
    per_voxel_bytes = t_pad * 128 * 4 * 8
    if ("v5" in kind) or ("v6" in kind):
        live_budget, vmem_limit = 48 << 20, 64 << 20   # 128 MiB physical VMEM
    else:
        live_budget, vmem_limit = 20 << 20, 32 << 20   # v7x / unknown: 64 MiB
    vb_cap = max(8, (live_budget // per_voxel_bytes) // 8 * 8)

    vb = min(voxel_block if voxel_block is not None else 256, vb_cap)
    vb = max(8, _rup(vb, 8))
    # Small K: keep >= 4 grid steps so both TensorCores (v7x) have work.
    if K <= 2 * vb:
        vb = max(8, min(vb, _rup(-(-K // 4), 8)))
    vb = min(vb, _rup(K, 8))

    k_pad = _rup(K, vb)
    if k_pad != K:
        x = jnp.pad(x, ((0, k_pad - K), (0, 0), (0, 0)))

    kernel = functools.partial(_svfe_kernel, t_valid=T)

    out = pl.pallas_call(
        kernel,
        out_shape=jax.ShapeDtypeStruct((k_pad, c3), jnp.float32),
        grid_spec=pltpu.PrefetchScalarGridSpec(
            num_scalar_prefetch=0,
            grid=(k_pad // vb,),
            in_specs=[
                pl.BlockSpec((vb, t_pad, cin), lambda i: (i, 0, 0)),
                # Constant index_map -> weights/biases stay resident in VMEM.
                pl.BlockSpec(w1m.shape, lambda i: (0, 0)),
                pl.BlockSpec(b1.shape, lambda i: (0, 0)),
                pl.BlockSpec(w2am.shape, lambda i: (0, 0)),
                pl.BlockSpec(w2bm.shape, lambda i: (0, 0)),
                pl.BlockSpec(b2.shape, lambda i: (0, 0)),
                pl.BlockSpec(w3am.shape, lambda i: (0, 0)),
                pl.BlockSpec(w3bm.shape, lambda i: (0, 0)),
                pl.BlockSpec(b3.shape, lambda i: (0, 0)),
            ],
            # Lane-dense output block: last dim 128 -> unmasked full-width stores.
            out_specs=pl.BlockSpec((vb, c3), lambda i: (i, 0)),
        ),
        compiler_params=pltpu.CompilerParams(
            dimension_semantics=("parallel",),
            vmem_limit_bytes=vmem_limit),
    )(x, w1m, b1, w2am, w2bm, b2, w3am, w3bm, b3)
    return out[:K]


def _make_folded_fcn_params(key, cin, cout, eps=1e-5):
    """Deterministic FCN(cin, cout) params with eval-mode BN folded in."""
    ks = jax.random.split(key, 6)
    w = 0.1 * jax.random.normal(ks[0], (cout, cin), jnp.float32)     # Linear.weight
    b = 0.1 * jax.random.normal(ks[1], (cout,), jnp.float32)         # Linear.bias
    gamma = 1.0 + 0.1 * jax.random.normal(ks[2], (cout,), jnp.float32)
    beta = 0.1 * jax.random.normal(ks[3], (cout,), jnp.float32)
    running_mean = 0.1 * jax.random.normal(ks[4], (cout,), jnp.float32)
    running_var = 0.5 + jax.random.uniform(ks[5], (cout,), jnp.float32)
    # BN(xW^T + b) = s*(xW^T + b - mu) + beta,  s = gamma / sqrt(var + eps)
    s = gamma / jnp.sqrt(running_var + eps)
    w_folded = (w * s[:, None]).T                       # (cin, cout)
    b_folded = (s * (b - running_mean) + beta)[None, :]
    return w_folded, b_folded


def make_svfe_params(key):
    """SVFE params: VFE(7,32).fcn, VFE(32,128).fcn, FCN(128,128) (BN-folded)."""
    k1, k2, k3 = jax.random.split(key, 3)
    w1, b1 = _make_folded_fcn_params(k1, 7, 16)      # VFE(7,32):   units = 16
    w2, b2 = _make_folded_fcn_params(k2, 32, 64)     # VFE(32,128): units = 64
    w3, b3 = _make_folded_fcn_params(k3, 128, 128)   # final FCN(128,128)
    return (w1, b1, w2, b2, w3, b3)


def svfe_reference(x, params):
    """Pure-jnp reference of SVFE.forward (eval-mode BN folded)."""
    w1, b1, w2, b2, w3, b3 = params
    prec = jax.lax.Precision.HIGHEST
    mask = (jnp.max(x, axis=2) != 0).astype(jnp.float32)[:, :, None]

    def fcn(xin, w, b):
        K_, T_, c = xin.shape
        h = jnp.dot(xin.reshape(K_ * T_, c), w, precision=prec) + b
        return jnp.maximum(h, 0.0).reshape(K_, T_, -1)

    def vfe(xin, w, b):
        pwf = fcn(xin, w, b)
        laf = jnp.max(pwf, axis=1, keepdims=True)
        pwcf = jnp.concatenate([pwf, jnp.broadcast_to(laf, pwf.shape)], axis=2)
        return pwcf * mask

    x1 = vfe(x, w1, b1)                  # (K, T, 32)
    x2 = vfe(x1, w2, b2)                 # (K, T, 128)
    h = fcn(x2, w3, b3)                  # (K, T, 128)
    return jnp.max(h, axis=1)            # (K, 128)


if __name__ == "__main__":
    # Small VoxelNet-like shapes: K voxels, T = 35 points/voxel (cfg.T),
    # 7 input point features; final voxel feature dim 128.
    key = jax.random.PRNGKey(0)
    kp, krest = jax.random.split(key)
    params = make_svfe_params(kp)

    ok = True
    for K, T in [(32, 35), (256, 35)]:
        kx, kn, krest = jax.random.split(krest, 3)
        x = jax.random.normal(kx, (K, T, 7), jnp.float32)
        # Emulate VoxelNet padding: zero out the trailing points of each voxel.
        n_pts = jax.random.randint(kn, (K,), 1, T + 1)
        valid = (jnp.arange(T)[None, :] < n_pts[:, None]).astype(jnp.float32)
        x = x * valid[:, :, None]

        ref = svfe_reference(x, params)

        # Exact f32-matmul path: strict tolerance.
        out = jax.block_until_ready(
            svfe_forward(x, params, matmul_dtype=jnp.float32))
        assert out.shape == (K, 128)
        if not jnp.allclose(out, ref, atol=1e-3, rtol=1e-3):
            ok = False
            print("f32 mismatch at K=%d, max abs err %.3e"
                  % (K, float(jnp.max(jnp.abs(out - ref)))))

        # bf16-operand path (default on v6e/v7x): looser tolerance.
        out_bf16 = jax.block_until_ready(
            svfe_forward(x, params, matmul_dtype=jnp.bfloat16))
        assert out_bf16.shape == (K, 128)
        if not jnp.allclose(out_bf16, ref, atol=5e-2, rtol=5e-2):
            ok = False
            print("bf16 mismatch at K=%d, max abs err %.3e"
                  % (K, float(jnp.max(jnp.abs(out_bf16 - ref)))))

    assert ok, "kernel output mismatch vs reference"
    print("KERNEL_OK")
</pallas_src>

<mosaic_0001>
module attributes {stable_mosaic.version = 11 : i64} {
  func.func @_svfe_kernel(%arg0: i32, %arg1: memref<8x40x7xf32, #tpu.memory_space<vmem>>, %arg2: memref<7x16xf32, #tpu.memory_space<vmem>>, %arg3: memref<1x16xf32, #tpu.memory_space<vmem>>, %arg4: memref<16x64xf32, #tpu.memory_space<vmem>>, %arg5: memref<16x64xf32, #tpu.memory_space<vmem>>, %arg6: memref<1x64xf32, #tpu.memory_space<vmem>>, %arg7: memref<64x128xf32, #tpu.memory_space<vmem>>, %arg8: memref<64x128xf32, #tpu.memory_space<vmem>>, %arg9: memref<1x128xf32, #tpu.memory_space<vmem>>, %arg10: memref<8x128xf32, #tpu.memory_space<vmem>>) attributes {dimension_semantics = [#tpu.dimension_semantics<parallel>], iteration_bounds = array<i64: 4>, scalar_prefetch = 0 : i64, scratch_operands = 0 : i64, tpu.core_type = #tpu.core_type<tc>, window_params = [{transform_indices = @transform_0, window_bounds = array<i64: 8, 40, 7>}, {pipeline_mode = #tpu.pipeline_mode<synchronous>, transform_indices = @transform_1, window_bounds = array<i64: 7, 16>}, {pipeline_mode = #tpu.pipeline_mode<synchronous>, transform_indices = @transform_2, window_bounds = array<i64: 1, 16>}, {pipeline_mode = #tpu.pipeline_mode<synchronous>, transform_indices = @transform_3, window_bounds = array<i64: 16, 64>}, {pipeline_mode = #tpu.pipeline_mode<synchronous>, transform_indices = @transform_4, window_bounds = array<i64: 16, 64>}, {pipeline_mode = #tpu.pipeline_mode<synchronous>, transform_indices = @transform_5, window_bounds = array<i64: 1, 64>}, {pipeline_mode = #tpu.pipeline_mode<synchronous>, transform_indices = @transform_6, window_bounds = array<i64: 64, 128>}, {pipeline_mode = #tpu.pipeline_mode<synchronous>, transform_indices = @transform_7, window_bounds = array<i64: 64, 128>}, {pipeline_mode = #tpu.pipeline_mode<synchronous>, transform_indices = @transform_8, window_bounds = array<i64: 1, 128>}, {transform_indices = @transform_9, window_bounds = array<i64: 8, 128>}]} {
    %c0 = arith.constant 0 : index
    %c0_0 = arith.constant 0 : index
    %c0_1 = arith.constant 0 : index
    %0 = vector.load %arg1[%c0, %c0_0, %c0_1] : memref<8x40x7xf32, #tpu.memory_space<vmem>>, vector<8x40x7xf32>
    %cst = arith.constant dense<0xFF800000> : vector<8x40xf32>
    %1 = vector.multi_reduction <maximumf>, %0, %cst [2] : vector<8x40x7xf32> to vector<8x40xf32>
    %2 = vector.shape_cast %1 : vector<8x40xf32> to vector<8x40x1xf32>
    %cst_2 = arith.constant 0.000000e+00 : f32
    %3 = vector.broadcast %cst_2 : f32 to vector<8x40x1xf32>
    %4 = arith.cmpf one, %2, %3 : vector<8x40x1xf32>
    %5 = arith.extui %4 : vector<8x40x1xi1> to vector<8x40x1xi32>
    %6 = arith.sitofp %5 : vector<8x40x1xi32> to vector<8x40x1xf32>
    %7 = tpu.iota {dimensions = array<i32: 0>} : vector<40x1xi32>
    %c35_i32 = arith.constant 35 : i32
    %8 = vector.broadcast %c35_i32 : i32 to vector<40x1xi32>
    %9 = arith.cmpi slt, %7, %8 : vector<40x1xi32>
    %10 = vector.shape_cast %0 : vector<8x40x7xf32> to vector<320x7xf32>
    %c0_3 = arith.constant 0 : index
    %c0_4 = arith.constant 0 : index
    %11 = vector.load %arg2[%c0_3, %c0_4] : memref<7x16xf32, #tpu.memory_space<vmem>>, vector<7x16xf32>
    %cst_5 = arith.constant dense<0.000000e+00> : vector<320x16xf32>
    %12 = tpu.matmul %10, %11, %cst_5 {dimension_numbers = #tpu.dot_dimension_numbers<[1], [0], [0], [1], [0, 0, 1, 1], [], []>} : vector<320x7xf32>, vector<7x16xf32>, vector<320x16xf32> -> vector<320x16xf32>
    %c0_6 = arith.constant 0 : index
    %c0_7 = arith.constant 0 : index
    %13 = vector.load %arg3[%c0_6, %c0_7] : memref<1x16xf32, #tpu.memory_space<vmem>>, vector<1x16xf32>
    %14 = vector.broadcast %13 : vector<1x16xf32> to vector<320x16xf32>
    %15 = arith.addf %12, %14 : vector<320x16xf32>
    %cst_8 = arith.constant 0.000000e+00 : f32
    %16 = vector.broadcast %cst_8 : f32 to vector<320x16xf32>
    %17 = arith.maximumf %15, %16 : vector<320x16xf32>
    %18 = vector.shape_cast %17 : vector<320x16xf32> to vector<8x40x16xf32>
    %cst_9 = arith.constant 0.000000e+00 : f32
    %19 = vector.shape_cast %9 : vector<40x1xi1> to vector<1x40x1xi1>
    %20 = vector.broadcast %19 : vector<1x40x1xi1> to vector<8x40x16xi1>
    %21 = vector.broadcast %cst_9 : f32 to vector<8x40x16xf32>
    %22 = arith.select %20, %18, %21 : vector<8x40x16xi1>, vector<8x40x16xf32>
    %cst_10 = arith.constant dense<0xFF800000> : vector<8x16xf32>
    %23 = vector.multi_reduction <maximumf>, %22, %cst_10 [1] : vector<8x40x16xf32> to vector<8x16xf32>
    %24 = vector.shape_cast %23 : vector<8x16xf32> to vector<8x1x16xf32>
    %25 = vector.shape_cast %24 : vector<8x1x16xf32> to vector<8x16xf32>
    %c0_11 = arith.constant 0 : index
    %c0_12 = arith.constant 0 : index
    %26 = vector.load %arg5[%c0_11, %c0_12] : memref<16x64xf32, #tpu.memory_space<vmem>>, vector<16x64xf32>
    %cst_13 = arith.constant dense<0.000000e+00> : vector<8x64xf32>
    %27 = tpu.matmul %25, %26, %cst_13 {dimension_numbers = #tpu.dot_dimension_numbers<[1], [0], [0], [1], [0, 0, 1, 1], [], []>} : vector<8x16xf32>, vector<16x64xf32>, vector<8x64xf32> -> vector<8x64xf32>
    %28 = vector.shape_cast %18 : vector<8x40x16xf32> to vector<320x16xf32>
    %c0_14 = arith.constant 0 : index
    %c0_15 = arith.constant 0 : index
    %29 = vector.load %arg4[%c0_14, %c0_15] : memref<16x64xf32, #tpu.memory_space<vmem>>, vector<16x64xf32>
    %cst_16 = arith.constant dense<0.000000e+00> : vector<320x64xf32>
    %30 = tpu.matmul %28, %29, %cst_16 {dimension_numbers = #tpu.dot_dimension_numbers<[1], [0], [0], [1], [0, 0, 1, 1], [], []>} : vector<320x16xf32>, vector<16x64xf32>, vector<320x64xf32> -> vector<320x64xf32>
    %31 = vector.shape_cast %30 : vector<320x64xf32> to vector<8x40x64xf32>
    %32 = vector.shape_cast %27 : vector<8x64xf32> to vector<8x1x64xf32>
    %33 = vector.broadcast %32 : vector<8x1x64xf32> to vector<8x40x64xf32>
    %34 = arith.addf %31, %33 : vector<8x40x64xf32>
    %35 = vector.broadcast %6 : vector<8x40x1xf32> to vector<8x40x64xf32>
    %36 = arith.mulf %35, %34 : vector<8x40x64xf32>
    %c0_17 = arith.constant 0 : index
    %c0_18 = arith.constant 0 : index
    %37 = vector.load %arg6[%c0_17, %c0_18] : memref<1x64xf32, #tpu.memory_space<vmem>>, vector<1x64xf32>
    %38 = vector.shape_cast %37 : vector<1x64xf32> to vector<1x1x64xf32>
    %39 = vector.broadcast %38 : vector<1x1x64xf32> to vector<8x40x64xf32>
    %40 = arith.addf %36, %39 : vector<8x40x64xf32>
    %cst_19 = arith.constant 0.000000e+00 : f32
    %41 = vector.broadcast %cst_19 : f32 to vector<8x40x64xf32>
    %42 = arith.maximumf %40, %41 : vector<8x40x64xf32>
    %cst_20 = arith.constant 0.000000e+00 : f32
    %43 = vector.shape_cast %9 : vector<40x1xi1> to vector<1x40x1xi1>
    %44 = vector.broadcast %43 : vector<1x40x1xi1> to vector<8x40x64xi1>
    %45 = vector.broadcast %cst_20 : f32 to vector<8x40x64xf32>
    %46 = arith.select %44, %42, %45 : vector<8x40x64xi1>, vector<8x40x64xf32>
    %cst_21 = arith.constant dense<0xFF800000> : vector<8x64xf32>
    %47 = vector.multi_reduction <maximumf>, %46, %cst_21 [1] : vector<8x40x64xf32> to vector<8x64xf32>
    %48 = vector.shape_cast %47 : vector<8x64xf32> to vector<8x1x64xf32>
    %49 = vector.shape_cast %48 : vector<8x1x64xf32> to vector<8x64xf32>
    %c0_22 = arith.constant 0 : index
    %c0_23 = arith.constant 0 : index
    %50 = vector.load %arg8[%c0_22, %c0_23] : memref<64x128xf32, #tpu.memory_space<vmem>>, vector<64x128xf32>
    %cst_24 = arith.constant dense<0.000000e+00> : vector<8x128xf32>
    %51 = tpu.matmul %49, %50, %cst_24 {dimension_numbers = #tpu.dot_dimension_numbers<[1], [0], [0], [1], [0, 0, 1, 1], [], []>} : vector<8x64xf32>, vector<64x128xf32>, vector<8x128xf32> -> vector<8x128xf32>
    %52 = vector.shape_cast %42 : vector<8x40x64xf32> to vector<320x64xf32>
    %c0_25 = arith.constant 0 : index
    %c0_26 = arith.constant 0 : index
    %53 = vector.load %arg7[%c0_25, %c0_26] : memref<64x128xf32, #tpu.memory_space<vmem>>, vector<64x128xf32>
    %cst_27 = arith.constant dense<0.000000e+00> : vector<320x128xf32>
    %54 = tpu.matmul %52, %53, %cst_27 {dimension_numbers = #tpu.dot_dimension_numbers<[1], [0], [0], [1], [0, 0, 1, 1], [], []>} : vector<320x64xf32>, vector<64x128xf32>, vector<320x128xf32> -> vector<320x128xf32>
    %55 = vector.shape_cast %54 : vector<320x128xf32> to vector<8x40x128xf32>
    %56 = vector.shape_cast %51 : vector<8x128xf32> to vector<8x1x128xf32>
    %57 = vector.broadcast %56 : vector<8x1x128xf32> to vector<8x40x128xf32>
    %58 = arith.addf %55, %57 : vector<8x40x128xf32>
    %59 = vector.broadcast %6 : vector<8x40x1xf32> to vector<8x40x128xf32>
    %60 = arith.mulf %59, %58 : vector<8x40x128xf32>
    %c0_28 = arith.constant 0 : index
    %c0_29 = arith.constant 0 : index
    %61 = vector.load %arg9[%c0_28, %c0_29] : memref<1x128xf32, #tpu.memory_space<vmem>>, vector<1x128xf32>
    %62 = vector.shape_cast %61 : vector<1x128xf32> to vector<1x1x128xf32>
    %63 = vector.broadcast %62 : vector<1x1x128xf32> to vector<8x40x128xf32>
    %64 = arith.addf %60, %63 : vector<8x40x128xf32>
    %cst_30 = arith.constant 0.000000e+00 : f32
    %65 = vector.broadcast %cst_30 : f32 to vector<8x40x128xf32>
    %66 = arith.maximumf %64, %65 : vector<8x40x128xf32>
    %cst_31 = arith.constant 0.000000e+00 : f32
    %67 = vector.shape_cast %9 : vector<40x1xi1> to vector<1x40x1xi1>
    %68 = vector.broadcast %67 : vector<1x40x1xi1> to vector<8x40x128xi1>
    %69 = vector.broadcast %cst_31 : f32 to vector<8x40x128xf32>
    %70 = arith.select %68, %66, %69 : vector<8x40x128xi1>, vector<8x40x128xf32>
    %cst_32 = arith.constant dense<0xFF800000> : vector<8x128xf32>
    %71 = vector.multi_reduction <maximumf>, %70, %cst_32 [1] : vector<8x40x128xf32> to vector<8x128xf32>
    %72 = vector.shape_cast %71 : vector<8x128xf32> to vector<8x1x128xf32>
    %73 = vector.shape_cast %72 : vector<8x1x128xf32> to vector<8x128xf32>
    %c0_33 = arith.constant 0 : index
    %c0_34 = arith.constant 0 : index
    %74 = vector.load %arg10[%c0_33, %c0_34] : memref<8x128xf32, #tpu.memory_space<vmem>>, vector<8x128xf32>
    tpu.vector_store %arg10[%c0_33, %c0_34], %73 {strides = array<i32>} : memref<8x128xf32, #tpu.memory_space<vmem>>, vector<8x128xf32>,
    return
  }
  func.func @transform_0(%arg0: i32) -> (i32, i32, i32) {
    %c0_i32 = arith.constant 0 : i32
    %c0_i32_0 = arith.constant 0 : i32
    %c0_i32_1 = arith.constant 0 : i32
    return %arg0, %c0_i32, %c0_i32_0 : i32, i32, i32
  }
  func.func @transform_1(%arg0: i32) -> (i32, i32) {
    %c0_i32 = arith.constant 0 : i32
    %c0_i32_0 = arith.constant 0 : i32
    %c0_i32_1 = arith.constant 0 : i32
    return %c0_i32, %c0_i32_0 : i32, i32
  }
  func.func @transform_2(%arg0: i32) -> (i32, i32) {
    %c0_i32 = arith.constant 0 : i32
    %c0_i32_0 = arith.constant 0 : i32
    %c0_i32_1 = arith.constant 0 : i32
    return %c0_i32, %c0_i32_0 : i32, i32
  }
  func.func @transform_3(%arg0: i32) -> (i32, i32) {
    %c0_i32 = arith.constant 0 : i32
    %c0_i32_0 = arith.constant 0 : i32
    %c0_i32_1 = arith.constant 0 : i32
    return %c0_i32, %c0_i32_0 : i32, i32
  }
  func.func @transform_4(%arg0: i32) -> (i32, i32) {
    %c0_i32 = arith.constant 0 : i32
    %c0_i32_0 = arith.constant 0 : i32
    %c0_i32_1 = arith.constant 0 : i32
    return %c0_i32, %c0_i32_0 : i32, i32
  }
  func.func @transform_5(%arg0: i32) -> (i32, i32) {
    %c0_i32 = arith.constant 0 : i32
    %c0_i32_0 = arith.constant 0 : i32
    %c0_i32_1 = arith.constant 0 : i32
    return %c0_i32, %c0_i32_0 : i32, i32
  }
  func.func @transform_6(%arg0: i32) -> (i32, i32) {
    %c0_i32 = arith.constant 0 : i32
    %c0_i32_0 = arith.constant 0 : i32
    %c0_i32_1 = arith.constant 0 : i32
    return %c0_i32, %c0_i32_0 : i32, i32
  }
  func.func @transform_7(%arg0: i32) -> (i32, i32) {
    %c0_i32 = arith.constant 0 : i32
    %c0_i32_0 = arith.constant 0 : i32
    %c0_i32_1 = arith.constant 0 : i32
    return %c0_i32, %c0_i32_0 : i32, i32
  }
  func.func @transform_8(%arg0: i32) -> (i32, i32) {
    %c0_i32 = arith.constant 0 : i32
    %c0_i32_0 = arith.constant 0 : i32
    %c0_i32_1 = arith.constant 0 : i32
    return %c0_i32, %c0_i32_0 : i32, i32
  }
  func.func @transform_9(%arg0: i32) -> (i32, i32) {
    %c0_i32 = arith.constant 0 : i32
    %c0_i32_0 = arith.constant 0 : i32
    return %arg0, %c0_i32 : i32, i32
  }
}

</mosaic_0001>

<llo_original>
// kernel: tpu_custom_call.1
$region0: #{tpu_custom_call.1}
  #allocation0 [shape = 'u32[]', space=smem, size = 0x4, offset = 0x4, fixed_abs, tag = 'smem constant byte address 0x4 - core index']
  #allocation1 [shape = 'u32[144,128]{1,0:T(1,128)}', space=vmem, size = 0x12000, scoped, tag = 'internal scratch']
  %s0 = inlined_call_operand.vmem [shape: f32[32,40,7], index: 0, kind: input, shape index: {}]
  %s1 = inlined_call_operand.vmem [shape: f32[7,16], index: 1, kind: input, shape index: {}]
  %s2 = inlined_call_operand.vmem [shape: f32[1,16], index: 2, kind: input, shape index: {}]
  %s3 = inlined_call_operand.vmem [shape: f32[16,64], index: 3, kind: input, shape index: {}]
  %s4 = inlined_call_operand.vmem [shape: f32[16,64], index: 4, kind: input, shape index: {}]
  %s5 = inlined_call_operand.vmem [shape: f32[1,64], index: 5, kind: input, shape index: {}]
  %s6 = inlined_call_operand.vmem [shape: f32[64,128], index: 6, kind: input, shape index: {}]
  %s7 = inlined_call_operand.vmem [shape: f32[64,128], index: 7, kind: input, shape index: {}]
  %s8 = inlined_call_operand.vmem [shape: f32[1,128], index: 8, kind: input, shape index: {}]
  %s9 = inlined_call_operand.hbm [shape: f32[32,128], index: 9, kind: output, shape index: {}]
  %s10 = sld [smem:[#allocation0]]
  $region69: #{tpu_custom_call.1} parent=0
    _
  %s12 = ssub.s32 1, %s10
  %s13 = scalar_select 0, %s12, %s10
  $region1: #{tpu_custom_call.1} parent=0
    #allocation2 [shape = 'u8[8192]{0}', space=vmem, size = 0x2000, scoped, tag = 'output window, operand 0']
    #allocation3 [shape = 's32[2]{0}', space=sflag, size = 0x8, scoped, tag = 'scoped memory for tpu_custom_call.1']
    %14 = vsyncpa [#allocation3], 0
    %s15 = scalar_lea.sflag [#allocation3], 1
    %16 = vsyncpa %s15, 0
    loop: start=0, step=1, limit=6
    $region2: #{tpu_custom_call.1} parent=1 // loop_pre_header
      _
    $region3: #{tpu_custom_call.1} parent=1 // loop_header
      %s18 = sphi 0, %s22
      %p19 = scmp.ge.s32.totalorder %s18, 6
      %s28 = sphi 0, %s30
      %s31 = sphi 0, %s28
      %s32 = sphi 0, %s31
      %s48 = sphi 0, %s32
      %s52 = sphi 0, %s52
      %s54 = sphi 0, %s52
      %s55 = sphi 0, %s54
      %s69 = sphi 0, %s55
      %s73 = sphi 0, %s73
      %s75 = sphi 0, %s73
      %s76 = sphi 0, %s75
      %s90 = sphi 0, %s76
      %s94 = sphi 0, %s94
      %s96 = sphi 0, %s94
      %s97 = sphi 0, %s96
      %s111 = sphi 0, %s97
      %s115 = sphi 0, %s115
      %s117 = sphi 0, %s115
      %s118 = sphi 0, %s117
      %s132 = sphi 0, %s118
      %s136 = sphi 0, %s136
      %s138 = sphi 0, %s136
      %s139 = sphi 0, %s138
      %s153 = sphi 0, %s139
      %s157 = sphi 0, %s157
      %s159 = sphi 0, %s157
      %s160 = sphi 0, %s159
      %s174 = sphi 0, %s160
      %s178 = sphi 0, %s178
      %s180 = sphi 0, %s178
      %s181 = sphi 0, %s180
      %s195 = sphi 0, %s181
      %s199 = sphi 0, %s199
      %s201 = sphi 0, %s199
      %s202 = sphi 0, %s201
      %s216 = sphi 0, %s202
      %s222 = sphi 0, %s224
      %s225 = sphi 0, %s222
      %s226 = sphi 0, %s225
      %s242 = sphi 0, %s226
    $region4: #{tpu_custom_call.1} parent=1 // loop_header_branch
      %21 = sbr.rel (%p19) target = $region8
    $region5: #{tpu_custom_call.1} parent=1 // loop_body
      %s23 = ssub.s32 %s18, 1
      %s24 = ssub.s32 %s18, 2
      %s25 = sadd.s32 %s18, 1
      %s26 = ssub.s32 %s18, %s25
      %p27 = scmp.eq.s32.totalorder %s26, 0
      %s29 = sadd.s32 %s28, 1
      %s30 = scalar_select %p27, %s28, %s29
      %p33 = pneg %p27
      %p34 = scmp.eq.s32.totalorder %s18, 3
      %p35 = por %p33, %p34
      %p36 = scmp.ne.s32.totalorder %s28, %s31
      %p37 = scmp.eq.s32.totalorder %s18, 0
      %p38 = por %p36, %p37
      %p39 = scmp.ne.s32.totalorder %s28, %s31
      %p40 = scmp.eq.s32.totalorder %s23, 3
      %p41 = por %p39, %p40
      %p42 = scmp.ne.s32.totalorder %s31, %s32
      %p43 = scmp.eq.s32.totalorder %s23, 0
      %p44 = por %p42, %p43
      %p45 = scmp.ne.s32.totalorder %s31, %s32
      %p46 = scmp.eq.s32.totalorder %s24, 3
      %p47 = por %p45, %p46
      %p49 = scmp.ne.s32.totalorder %s32, %s48
      %p50 = scmp.eq.s32.totalorder %s24, 0
      %p51 = por %p49, %p50
      %s53 = sadd.s32 %s52, 1
      %p56 = scmp.eq.s32.totalorder %s18, 3
      %p57 = scmp.ne.s32.totalorder %s52, %s54
      %p58 = scmp.eq.s32.totalorder %s18, 0
      %p59 = por %p57, %p58
      %p60 = scmp.ne.s32.totalorder %s52, %s54
      %p61 = scmp.eq.s32.totalorder %s23, 3
      %p62 = por %p60, %p61
      %p63 = scmp.ne.s32.totalorder %s54, %s55
      %p64 = scmp.eq.s32.totalorder %s23, 0
      %p65 = por %p63, %p64
      %p66 = scmp.ne.s32.totalorder %s54, %s55
      %p67 = scmp.eq.s32.totalorder %s24, 3
      %p68 = por %p66, %p67
      %p70 = scmp.ne.s32.totalorder %s55, %s69
      %p71 = scmp.eq.s32.totalorder %s24, 0
      %p72 = por %p70, %p71
      %s74 = sadd.s32 %s73, 1
      %p77 = scmp.eq.s32.totalorder %s18, 3
      %p78 = scmp.ne.s32.totalorder %s73, %s75
      %p79 = scmp.eq.s32.totalorder %s18, 0
      %p80 = por %p78, %p79
      %p81 = scmp.ne.s32.totalorder %s73, %s75
      %p82 = scmp.eq.s32.totalorder %s23, 3
      %p83 = por %p81, %p82
      %p84 = scmp.ne.s32.totalorder %s75, %s76
      %p85 = scmp.eq.s32.totalorder %s23, 0
      %p86 = por %p84, %p85
      %p87 = scmp.ne.s32.totalorder %s75, %s76
      %p88 = scmp.eq.s32.totalorder %s24, 3
      %p89 = por %p87, %p88
      %p91 = scmp.ne.s32.totalorder %s76, %s90
      %p92 = scmp.eq.s32.totalorder %s24, 0
      %p93 = por %p91, %p92
      %s95 = sadd.s32 %s94, 1
      %p98 = scmp.eq.s32.totalorder %s18, 3
      %p99 = scmp.ne.s32.totalorder %s94, %s96
      %p100 = scmp.eq.s32.totalorder %s18, 0
      %p101 = por %p99, %p100
      %p102 = scmp.ne.s32.totalorder %s94, %s96
      %p103 = scmp.eq.s32.totalorder %s23, 3
      %p104 = por %p102, %p103
      %p105 = scmp.ne.s32.totalorder %s96, %s97
      %p106 = scmp.eq.s32.totalorder %s23, 0
      %p107 = por %p105, %p106
      %p108 = scmp.ne.s32.totalorder %s96, %s97
      %p109 = scmp.eq.s32.totalorder %s24, 3
      %p110 = por %p108, %p109
      %p112 = scmp.ne.s32.totalorder %s97, %s111
      %p113 = scmp.eq.s32.totalorder %s24, 0
      %p114 = por %p112, %p113
      %s116 = sadd.s32 %s115, 1
      %p119 = scmp.eq.s32.totalorder %s18, 3
      %p120 = scmp.ne.s32.totalorder %s115, %s117
      %p121 = scmp.eq.s32.totalorder %s18, 0
      %p122 = por %p120, %p121
      %p123 = scmp.ne.s32.totalorder %s115, %s117
      %p124 = scmp.eq.s32.totalorder %s23, 3
      %p125 = por %p123, %p124
      %p126 = scmp.ne.s32.totalorder %s117, %s118
      %p127 = scmp.eq.s32.totalorder %s23, 0
      %p128 = por %p126, %p127
      %p129 = scmp.ne.s32.totalorder %s117, %s118
      %p130 = scmp.eq.s32.totalorder %s24, 3
      %p131 = por %p129, %p130
      %p133 = scmp.ne.s32.totalorder %s118, %s132
      %p134 = scmp.eq.s32.totalorder %s24, 0
      %p135 = por %p133, %p134
      %s137 = sadd.s32 %s136, 1
      %p140 = scmp.eq.s32.totalorder %s18, 3
      %p141 = scmp.ne.s32.totalorder %s136, %s138
      %p142 = scmp.eq.s32.totalorder %s18, 0
      %p143 = por %p141, %p142
      %p144 = scmp.ne.s32.totalorder %s136, %s138
      %p145 = scmp.eq.s32.totalorder %s23, 3
      %p146 = por %p144, %p145
      %p147 = scmp.ne.s32.totalorder %s138, %s139
      %p148 = scmp.eq.s32.totalorder %s23, 0
      %p149 = por %p147, %p148
      %p150 = scmp.ne.s32.totalorder %s138, %s139
      %p151 = scmp.eq.s32.totalorder %s24, 3
      %p152 = por %p150, %p151
      %p154 = scmp.ne.s32.totalorder %s139, %s153
      %p155 = scmp.eq.s32.totalorder %s24, 0
      %p156 = por %p154, %p155
      %s158 = sadd.s32 %s157, 1
      %p161 = scmp.eq.s32.totalorder %s18, 3
      %p162 = scmp.ne.s32.totalorder %s157, %s159
      %p163 = scmp.eq.s32.totalorder %s18, 0
      %p164 = por %p162, %p163
      %p165 = scmp.ne.s32.totalorder %s157, %s159
      %p166 = scmp.eq.s32.totalorder %s23, 3
      %p167 = por %p165, %p166
      %p168 = scmp.ne.s32.totalorder %s159, %s160
      %p169 = scmp.eq.s32.totalorder %s23, 0
      %p170 = por %p168, %p169
      %p171 = scmp.ne.s32.totalorder %s159, %s160
      %p172 = scmp.eq.s32.totalorder %s24, 3
      %p173 = por %p171, %p172
      %p175 = scmp.ne.s32.totalorder %s160, %s174
      %p176 = scmp.eq.s32.totalorder %s24, 0
      %p177 = por %p175, %p176
      %s179 = sadd.s32 %s178, 1
      %p182 = scmp.eq.s32.totalorder %s18, 3
      %p183 = scmp.ne.s32.totalorder %s178, %s180
      %p184 = scmp.eq.s32.totalorder %s18, 0
      %p185 = por %p183, %p184
      %p186 = scmp.ne.s32.totalorder %s178, %s180
      %p187 = scmp.eq.s32.totalorder %s23, 3
      %p188 = por %p186, %p187
      %p189 = scmp.ne.s32.totalorder %s180, %s181
      %p190 = scmp.eq.s32.totalorder %s23, 0
      %p191 = por %p189, %p190
      %p192 = scmp.ne.s32.totalorder %s180, %s181
      %p193 = scmp.eq.s32.totalorder %s24, 3
      %p194 = por %p192, %p193
      %p196 = scmp.ne.s32.totalorder %s181, %s195
      %p197 = scmp.eq.s32.totalorder %s24, 0
      %p198 = por %p196, %p197
      %s200 = sadd.s32 %s199, 1
      %p203 = scmp.eq.s32.totalorder %s18, 3
      %p204 = scmp.ne.s32.totalorder %s199, %s201
      %p205 = scmp.eq.s32.totalorder %s18, 0
      %p206 = por %p204, %p205
      %p207 = scmp.ne.s32.totalorder %s199, %s201
      %p208 = scmp.eq.s32.totalorder %s23, 3
      %p209 = por %p207, %p208
      %p210 = scmp.ne.s32.totalorder %s201, %s202
      %p211 = scmp.eq.s32.totalorder %s23, 0
      %p212 = por %p210, %p211
      %p213 = scmp.ne.s32.totalorder %s201, %s202
      %p214 = scmp.eq.s32.totalorder %s24, 3
      %p215 = por %p213, %p214
      %p217 = scmp.ne.s32.totalorder %s202, %s216
      %p218 = scmp.eq.s32.totalorder %s24, 0
      %p219 = por %p217, %p218
      %s220 = ssub.s32 %s18, %s25
      %p221 = scmp.eq.s32.totalorder %s220, 0
      %s223 = sadd.s32 %s222, 1
      %s224 = scalar_select %p221, %s222, %s223
      %p227 = pneg %p221
      %p228 = scmp.eq.s32.totalorder %s18, 3
      %p229 = por %p227, %p228
      %p230 = scmp.ne.s32.totalorder %s222, %s225
      %p231 = scmp.eq.s32.totalorder %s18, 0
      %p232 = por %p230, %p231
      %p233 = scmp.ne.s32.totalorder %s222, %s225
      %p234 = scmp.eq.s32.totalorder %s23, 3
      %p235 = por %p233, %p234
      %p236 = scmp.ne.s32.totalorder %s225, %s226
      %p237 = scmp.eq.s32.totalorder %s23, 0
      %p238 = por %p236, %p237
      %p239 = scmp.ne.s32.totalorder %s225, %s226
      %p240 = scmp.eq.s32.totalorder %s24, 3
      %p241 = por %p239, %p240
      %p243 = scmp.ne.s32.totalorder %s226, %s242
      %p244 = scmp.eq.s32.totalorder %s24, 0
      %p245 = por %p243, %p244
      %p246 = scmp.le.s32.totalorder 1, %s18
      %p247 = scmp.lt.s32.totalorder %s18, 5
      %p248 = pnand %p246, %p247
      %p249 = pneg %p248
      // Predicated region
      $region9: #{tpu_custom_call.1} parent=5 // pred_check
        _
      $region10: #{tpu_custom_call.1} parent=5 // pred_check_branch
        %251 = sbr.rel (%p248) target = $region12
      $region11: #{tpu_custom_call.1} parent=5 // pred_region
        %s252 = ssub.s32 %s18, 1
        // Predicated region
        $region13: #{tpu_custom_call.1} parent=11 // pred_check
          %p253 = pneg %p65
        $region14: #{tpu_custom_call.1} parent=11 // pred_check_branch
          %255 = sbr.rel (%p253) target = $region16
        $region15: #{tpu_custom_call.1} parent=11 // pred_region
          _
        $region16: #{tpu_custom_call.1} parent=11 // pred_fallthru
          _
        // Predicated region
        $region17: #{tpu_custom_call.1} parent=11 // pred_check
          %p256 = pneg %p86
        $region18: #{tpu_custom_call.1} parent=11 // pred_check_branch
          %258 = sbr.rel (%p256) target = $region20
        $region19: #{tpu_custom_call.1} parent=11 // pred_region
          _
        $region20: #{tpu_custom_call.1} parent=11 // pred_fallthru
          _
        // Predicated region
        $region21: #{tpu_custom_call.1} parent=11 // pred_check
          %p259 = pneg %p107
        $region22: #{tpu_custom_call.1} parent=11 // pred_check_branch
          %261 = sbr.rel (%p259) target = $region24
        $region23: #{tpu_custom_call.1} parent=11 // pred_region
          _
        $region24: #{tpu_custom_call.1} parent=11 // pred_fallthru
          _
        // Predicated region
        $region25: #{tpu_custom_call.1} parent=11 // pred_check
          %p262 = pneg %p128
        $region26: #{tpu_custom_call.1} parent=11 // pred_check_branch
          %264 = sbr.rel (%p262) target = $region28
        $region27: #{tpu_custom_call.1} parent=11 // pred_region
          _
        $region28: #{tpu_custom_call.1} parent=11 // pred_fallthru
          _
        // Predicated region
        $region29: #{tpu_custom_call.1} parent=11 // pred_check
          %p265 = pneg %p149
        $region30: #{tpu_custom_call.1} parent=11 // pred_check_branch
          %267 = sbr.rel (%p265) target = $region32
        $region31: #{tpu_custom_call.1} parent=11 // pred_region
          _
        $region32: #{tpu_custom_call.1} parent=11 // pred_fallthru
          _
        // Predicated region
        $region33: #{tpu_custom_call.1} parent=11 // pred_check
          %p268 = pneg %p170
        $region34: #{tpu_custom_call.1} parent=11 // pred_check_branch
          %270 = sbr.rel (%p268) target = $region36
        $region35: #{tpu_custom_call.1} parent=11 // pred_region
          _
        $region36: #{tpu_custom_call.1} parent=11 // pred_fallthru
          _
        // Predicated region
        $region37: #{tpu_custom_call.1} parent=11 // pred_check
          %p271 = pneg %p191
        $region38: #{tpu_custom_call.1} parent=11 // pred_check_branch
          %273 = sbr.rel (%p271) target = $region40
        $region39: #{tpu_custom_call.1} parent=11 // pred_region
          _
        $region40: #{tpu_custom_call.1} parent=11 // pred_fallthru
          _
        // Predicated region
        $region41: #{tpu_custom_call.1} parent=11 // pred_check
          %p274 = pneg %p212
        $region42: #{tpu_custom_call.1} parent=11 // pred_check_branch
          %276 = sbr.rel (%p274) target = $region44
        $region43: #{tpu_custom_call.1} parent=11 // pred_region
          _
        $region44: #{tpu_custom_call.1} parent=11 // pred_fallthru
          _
      $region12: #{tpu_custom_call.1} parent=5 // pred_fallthru
        _
      %p277 = scmp.lt.s32.totalorder %s18, 4
      // Predicated region
      $region45: #{tpu_custom_call.1} parent=5 // pred_check
        %p278 = pneg %p277
      $region46: #{tpu_custom_call.1} parent=5 // pred_check_branch
        %280 = sbr.rel (%p278) target = $region48
      $region47: #{tpu_custom_call.1} parent=5 // pred_region
        // Predicated region
        $region49: #{tpu_custom_call.1} parent=47 // pred_check
          %p281 = pneg %p38
        $region50: #{tpu_custom_call.1} parent=47 // pred_check_branch
          %283 = sbr.rel (%p281) target = $region52
        $region51: #{tpu_custom_call.1} parent=47 // pred_region
          %s284 = smul.u32 8, %s18
          %p285 = scmp.lt.s32.totalorder %s284, 31
          %s286 = scalar_select %p285, %s284, 31
          %s287 = smul.addr %s286, 5
          %s288 = smul.addr %s287, 8
          %s289 = scalar_lea.vmem %s0, %s288
          %s290 = smul.u32 8, %s18
        $region52: #{tpu_custom_call.1} parent=47 // pred_fallthru
          _
      $region48: #{tpu_custom_call.1} parent=5 // pred_fallthru
        _
      %p291 = scmp.le.s32.totalorder 1, %s18
      %p292 = scmp.lt.s32.totalorder %s18, 5
      %p293 = pnand %p291, %p292
      %p294 = pneg %p293
      // Predicated region
      $region53: #{tpu_custom_call.1} parent=5 // pred_check
        _
      $region54: #{tpu_custom_call.1} parent=5 // pred_check_branch
        %296 = sbr.rel (%p293) target = $region56
      $region55: #{tpu_custom_call.1} parent=5 // pred_region
        %s297 = ssub.s32 %s18, 1
        %s298 = smul.u32 8, %s23
        %p299 = scmp.lt.s32.totalorder %s298, 31
        %s300 = scalar_select %p299, %s298, 31
        %s301 = smul.addr %s300, 5
        %s302 = smul.addr %s301, 8
        %s303 = scalar_lea.vmem %s0, %s302
        %p304 = pneg %p44
        %p305 = pneg %p41
        %p306 = pneg %p65
        %p307 = pneg %p62
        %p308 = pneg %p86
        %p309 = pneg %p83
        %p310 = pneg %p107
        %p311 = pneg %p104
        %p312 = pneg %p128
        %p313 = pneg %p125
        %p314 = pneg %p149
        %p315 = pneg %p146
        %p316 = pneg %p170
        %p317 = pneg %p167
        %p318 = pneg %p191
        %p319 = pneg %p188
        %p320 = pneg %p212
        %p321 = pneg %p209
        %p322 = pneg %p238
        %p323 = pneg %p235
        %s324 = sand.u32 %s225, 1
        %s325 = scalar_lea.sflag [#allocation3], %s324
        %s326 = sand.u32 %s225, 1
        %s327 = smul.addr %s326, 8
        %s328 = scalar_lea.vmem [#allocation2], %s327
        %s329 = smul.u32 8, %s23
        %p330 = scmp.lt.s32.totalorder %s329, 31
        %s331 = scalar_select %p330, %s329, 31
        %s332 = smul.addr %s331, 5
        %s333 = smul.addr %s332, 8
        %s334 = scalar_lea.vmem %s0, %s333
        %s335 = smul.u32 8, %s23
        %v336 = vld [vmem:[%s334] sm:$0xff]
        %v337 = vld [vmem:[%s334 + $0x8] sm:$0xff]
        %v338 = vld [vmem:[%s334 + $0x10] sm:$0xff]
        %v339 = vld [vmem:[%s334 + $0x18] sm:$0xff]
        %v340 = vld [vmem:[%s334 + $0x20] sm:$0xff]
        %v341 = vld [vmem:[%s334 + $0x28] sm:$0xff]
        %v342 = vld [vmem:[%s334 + $0x30] sm:$0xff]
        %v343 = vld [vmem:[%s334 + $0x38] sm:$0xff]
        %v344 = vld [vmem:[%s334 + $0x40] sm:$0xff]
        %v345 = vld [vmem:[%s334 + $0x48] sm:$0xff]
        %v346 = vld [vmem:[%s334 + $0x50] sm:$0xff]
        %v347 = vld [vmem:[%s334 + $0x58] sm:$0xff]
        %v348 = vld [vmem:[%s334 + $0x60] sm:$0xff]
        %v349 = vld [vmem:[%s334 + $0x68] sm:$0xff]
        %v350 = vld [vmem:[%s334 + $0x70] sm:$0xff]
        %v351 = vld [vmem:[%s334 + $0x78] sm:$0xff]
        %v352 = vld [vmem:[%s334 + $0x80] sm:$0xff]
        %v353 = vld [vmem:[%s334 + $0x88] sm:$0xff]
        %v354 = vld [vmem:[%s334 + $0x90] sm:$0xff]
        %v355 = vld [vmem:[%s334 + $0x98] sm:$0xff]
        %v356 = vld [vmem:[%s334 + $0xa0] sm:$0xff]
        %v357 = vld [vmem:[%s334 + $0xa8] sm:$0xff]
        %v358 = vld [vmem:[%s334 + $0xb0] sm:$0xff]
        %v359 = vld [vmem:[%s334 + $0xb8] sm:$0xff]
        %v360 = vld [vmem:[%s334 + $0xc0] sm:$0xff]
        %v361 = vld [vmem:[%s334 + $0xc8] sm:$0xff]
        %v362 = vld [vmem:[%s334 + $0xd0] sm:$0xff]
        %v363 = vld [vmem:[%s334 + $0xd8] sm:$0xff]
        %v364 = vld [vmem:[%s334 + $0xe0] sm:$0xff]
        %v365 = vld [vmem:[%s334 + $0xe8] sm:$0xff]
        %v366 = vld [vmem:[%s334 + $0xf0] sm:$0xff]
        %v367 = vld [vmem:[%s334 + $0xf8] sm:$0xff]
        %v368 = vld [vmem:[%s334 + $0x100] sm:$0xff]
        %v369 = vld [vmem:[%s334 + $0x108] sm:$0xff]
        %v370 = vld [vmem:[%s334 + $0x110] sm:$0xff]
        %v371 = vld [vmem:[%s334 + $0x118] sm:$0xff]
        %v372 = vld [vmem:[%s334 + $0x120] sm:$0xff]
        %v373 = vld [vmem:[%s334 + $0x128] sm:$0xff]
        %v374 = vld [vmem:[%s334 + $0x130] sm:$0xff]
        %v375 = vld [vmem:[%s334 + $0x138] sm:$0xff]
        %vm376 = vcmask 56320
        %v377 = vsel %vm376, %v336, -inf
        %378 = vmax.xlane.f32.xlu0 %v377
        %v379 = vpop.xlane.xlu0 %378
        %v380 = vsel %vm376, %v337, -inf
        %381 = vmax.xlane.f32.xlu0 %v380
        %v382 = vpop.xlane.xlu0 %381
        %v383 = vsel %vm376, %v338, -inf
        %384 = vmax.xlane.f32.xlu0 %v383
        %v385 = vpop.xlane.xlu0 %384
        %v386 = vsel %vm376, %v339, -inf
        %387 = vmax.xlane.f32.xlu0 %v386
        %v388 = vpop.xlane.xlu0 %387
        %v389 = vsel %vm376, %v340, -inf
        %390 = vmax.xlane.f32.xlu0 %v389
        %v391 = vpop.xlane.xlu0 %390
        %v392 = vsel %vm376, %v341, -inf
        %393 = vmax.xlane.f32.xlu0 %v392
        %v394 = vpop.xlane.xlu0 %393
        %v395 = vsel %vm376, %v342, -inf
        %396 = vmax.xlane.f32.xlu0 %v395
        %v397 = vpop.xlane.xlu0 %396
        %v398 = vsel %vm376, %v343, -inf
        %399 = vmax.xlane.f32.xlu0 %v398
        %v400 = vpop.xlane.xlu0 %399
        %v401 = vsel %vm376, %v344, -inf
        %402 = vmax.xlane.f32.xlu0 %v401
        %v403 = vpop.xlane.xlu0 %402
        %v404 = vsel %vm376, %v345, -inf
        %405 = vmax.xlane.f32.xlu0 %v404
        %v406 = vpop.xlane.xlu0 %405
        %v407 = vsel %vm376, %v346, -inf
        %408 = vmax.xlane.f32.xlu0 %v407
        %v409 = vpop.xlane.xlu0 %408
        %v410 = vsel %vm376, %v347, -inf
        %411 = vmax.xlane.f32.xlu0 %v410
        %v412 = vpop.xlane.xlu0 %411
        %v413 = vsel %vm376, %v348, -inf
        %414 = vmax.xlane.f32.xlu0 %v413
        %v415 = vpop.xlane.xlu0 %414
        %v416 = vsel %vm376, %v349, -inf
        %417 = vmax.xlane.f32.xlu0 %v416
        %v418 = vpop.xlane.xlu0 %417
        %v419 = vsel %vm376, %v350, -inf
        %420 = vmax.xlane.f32.xlu0 %v419
        %v421 = vpop.xlane.xlu0 %420
        %v422 = vsel %vm376, %v351, -inf
        %423 = vmax.xlane.f32.xlu0 %v422
        %v424 = vpop.xlane.xlu0 %423
        %v425 = vsel %vm376, %v352, -inf
        %426 = vmax.xlane.f32.xlu0 %v425
        %v427 = vpop.xlane.xlu0 %426
        %v428 = vsel %vm376, %v353, -inf
        %429 = vmax.xlane.f32.xlu0 %v428
        %v430 = vpop.xlane.xlu0 %429
        %v431 = vsel %vm376, %v354, -inf
        %432 = vmax.xlane.f32.xlu0 %v431
        %v433 = vpop.xlane.xlu0 %432
        %v434 = vsel %vm376, %v355, -inf
        %435 = vmax.xlane.f32.xlu0 %v434
        %v436 = vpop.xlane.xlu0 %435
        %v437 = vsel %vm376, %v356, -inf
        %438 = vmax.xlane.f32.xlu0 %v437
        %v439 = vpop.xlane.xlu0 %438
        %v440 = vsel %vm376, %v357, -inf
        %441 = vmax.xlane.f32.xlu0 %v440
        %v442 = vpop.xlane.xlu0 %441
        %v443 = vsel %vm376, %v358, -inf
        %444 = vmax.xlane.f32.xlu0 %v443
        %v445 = vpop.xlane.xlu0 %444
        %v446 = vsel %vm376, %v359, -inf
        %447 = vmax.xlane.f32.xlu0 %v446
        %v448 = vpop.xlane.xlu0 %447
        %v449 = vsel %vm376, %v360, -inf
        %450 = vmax.xlane.f32.xlu0 %v449
        %v451 = vpop.xlane.xlu0 %450
        %v452 = vsel %vm376, %v361, -inf
        %453 = vmax.xlane.f32.xlu0 %v452
        %v454 = vpop.xlane.xlu0 %453
        %v455 = vsel %vm376, %v362, -inf
        %456 = vmax.xlane.f32.xlu0 %v455
        %v457 = vpop.xlane.xlu0 %456
        %v458 = vsel %vm376, %v363, -inf
        %459 = vmax.xlane.f32.xlu0 %v458
        %v460 = vpop.xlane.xlu0 %459
        %v461 = vsel %vm376, %v364, -inf
        %462 = vmax.xlane.f32.xlu0 %v461
        %v463 = vpop.xlane.xlu0 %462
        %v464 = vsel %vm376, %v365, -inf
        %465 = vmax.xlane.f32.xlu0 %v464
        %v466 = vpop.xlane.xlu0 %465
        %v467 = vsel %vm376, %v366, -inf
        %468 = vmax.xlane.f32.xlu0 %v467
        %v469 = vpop.xlane.xlu0 %468
        %v470 = vsel %vm376, %v367, -inf
        %471 = vmax.xlane.f32.xlu0 %v470
        %v472 = vpop.xlane.xlu0 %471
        %v473 = vsel %vm376, %v368, -inf
        %474 = vmax.xlane.f32.xlu0 %v473
        %v475 = vpop.xlane.xlu0 %474
        %v476 = vsel %vm376, %v369, -inf
        %477 = vmax.xlane.f32.xlu0 %v476
        %v478 = vpop.xlane.xlu0 %477
        %v479 = vsel %vm376, %v370, -inf
        %480 = vmax.xlane.f32.xlu0 %v479
        %v481 = vpop.xlane.xlu0 %480
        %v482 = vsel %vm376, %v371, -inf
        %483 = vmax.xlane.f32.xlu0 %v482
        %v484 = vpop.xlane.xlu0 %483
        %v485 = vsel %vm376, %v372, -inf
        %486 = vmax.xlane.f32.xlu0 %v485
        %v487 = vpop.xlane.xlu0 %486
        %v488 = vsel %vm376, %v373, -inf
        %489 = vmax.xlane.f32.xlu0 %v488
        %v490 = vpop.xlane.xlu0 %489
        %v491 = vsel %vm376, %v374, -inf
        %492 = vmax.xlane.f32.xlu0 %v491
        %v493 = vpop.xlane.xlu0 %492
        %v494 = vsel %vm376, %v375, -inf
        %495 = vmax.xlane.f32.xlu0 %v494
        %v496 = vpop.xlane.xlu0 %495
        %vm497 = vcmp.ne.f32.partialorder %v379, 0.0
        %vm498 = vcmp.ne.f32.partialorder %v382, 0.0
        %vm499 = vcmp.ne.f32.partialorder %v385, 0.0
        %vm500 = vcmp.ne.f32.partialorder %v388, 0.0
        %vm501 = vcmp.ne.f32.partialorder %v391, 0.0
        %vm502 = vcmp.ne.f32.partialorder %v394, 0.0
        %vm503 = vcmp.ne.f32.partialorder %v397, 0.0
        %vm504 = vcmp.ne.f32.partialorder %v400, 0.0
        %vm505 = vcmp.ne.f32.partialorder %v403, 0.0
        %vm506 = vcmp.ne.f32.partialorder %v406, 0.0
        %vm507 = vcmp.ne.f32.partialorder %v409, 0.0
        %vm508 = vcmp.ne.f32.partialorder %v412, 0.0
        %vm509 = vcmp.ne.f32.partialorder %v415, 0.0
        %vm510 = vcmp.ne.f32.partialorder %v418, 0.0
        %vm511 = vcmp.ne.f32.partialorder %v421, 0.0
        %vm512 = vcmp.ne.f32.partialorder %v424, 0.0
        %vm513 = vcmp.ne.f32.partialorder %v427, 0.0
        %vm514 = vcmp.ne.f32.partialorder %v430, 0.0
        %vm515 = vcmp.ne.f32.partialorder %v433, 0.0
        %vm516 = vcmp.ne.f32.partialorder %v436, 0.0
        %vm517 = vcmp.ne.f32.partialorder %v439, 0.0
        %vm518 = vcmp.ne.f32.partialorder %v442, 0.0
        %vm519 = vcmp.ne.f32.partialorder %v445, 0.0
        %vm520 = vcmp.ne.f32.partialorder %v448, 0.0
        %vm521 = vcmp.ne.f32.partialorder %v451, 0.0
        %vm522 = vcmp.ne.f32.partialorder %v454, 0.0
        %vm523 = vcmp.ne.f32.partialorder %v457, 0.0
        %vm524 = vcmp.ne.f32.partialorder %v460, 0.0
        %vm525 = vcmp.ne.f32.partialorder %v463, 0.0
        %vm526 = vcmp.ne.f32.partialorder %v466, 0.0
        %vm527 = vcmp.ne.f32.partialorder %v469, 0.0
        %vm528 = vcmp.ne.f32.partialorder %v472, 0.0
        %vm529 = vcmp.ne.f32.partialorder %v475, 0.0
        %vm530 = vcmp.ne.f32.partialorder %v478, 0.0
        %vm531 = vcmp.ne.f32.partialorder %v481, 0.0
        %vm532 = vcmp.ne.f32.partialorder %v484, 0.0
        %vm533 = vcmp.ne.f32.partialorder %v487, 0.0
        %vm534 = vcmp.ne.f32.partialorder %v490, 0.0
        %vm535 = vcmp.ne.f32.partialorder %v493, 0.0
        %vm536 = vcmp.ne.f32.partialorder %v496, 0.0
        %v537 = vsel %vm497, 1, 0
        %v538 = vsel %vm498, 1, 0
        %v539 = vsel %vm499, 1, 0
        %v540 = vsel %vm500, 1, 0
        %v541 = vsel %vm501, 1, 0
        %v542 = vsel %vm502, 1, 0
        %v543 = vsel %vm503, 1, 0
        %v544 = vsel %vm504, 1, 0
        %v545 = vsel %vm505, 1, 0
        %v546 = vsel %vm506, 1, 0
        %v547 = vsel %vm507, 1, 0
        %v548 = vsel %vm508, 1, 0
        %v549 = vsel %vm509, 1, 0
        %v550 = vsel %vm510, 1, 0
        %v551 = vsel %vm511, 1, 0
        %v552 = vsel %vm512, 1, 0
        %v553 = vsel %vm513, 1, 0
        %v554 = vsel %vm514, 1, 0
        %v555 = vsel %vm515, 1, 0
        %v556 = vsel %vm516, 1, 0
        %v557 = vsel %vm517, 1, 0
        %v558 = vsel %vm518, 1, 0
        %v559 = vsel %vm519, 1, 0
        %v560 = vsel %vm520, 1, 0
        %v561 = vsel %vm521, 1, 0
        %v562 = vsel %vm522, 1, 0
        %v563 = vsel %vm523, 1, 0
        %v564 = vsel %vm524, 1, 0
        %v565 = vsel %vm525, 1, 0
        %v566 = vsel %vm526, 1, 0
        %v567 = vsel %vm527, 1, 0
        %v568 = vsel %vm528, 1, 0
        %v569 = vsel %vm529, 1, 0
        %v570 = vsel %vm530, 1, 0
        %v571 = vsel %vm531, 1, 0
        %v572 = vsel %vm532, 1, 0
        %v573 = vsel %vm533, 1, 0
        %v574 = vsel %vm534, 1, 0
        %v575 = vsel %vm535, 1, 0
        %v576 = vsel %vm536, 1, 0
        %v577 = vcvt.s32.f32 %v537
        %v578 = vcvt.s32.f32 %v538
        %v579 = vcvt.s32.f32 %v539
        %v580 = vcvt.s32.f32 %v540
        %v581 = vcvt.s32.f32 %v541
        %v582 = vcvt.s32.f32 %v542
        %v583 = vcvt.s32.f32 %v543
        %v584 = vcvt.s32.f32 %v544
        %v585 = vcvt.s32.f32 %v545
        %v586 = vcvt.s32.f32 %v546
        %v587 = vcvt.s32.f32 %v547
        %v588 = vcvt.s32.f32 %v548
        %v589 = vcvt.s32.f32 %v549
        %v590 = vcvt.s32.f32 %v550
        %v591 = vcvt.s32.f32 %v551
        %v592 = vcvt.s32.f32 %v552
        %v593 = vcvt.s32.f32 %v553
        %v594 = vcvt.s32.f32 %v554
        %v595 = vcvt.s32.f32 %v555
        %v596 = vcvt.s32.f32 %v556
        %v597 = vcvt.s32.f32 %v557
        %v598 = vcvt.s32.f32 %v558
        %v599 = vcvt.s32.f32 %v559
        %v600 = vcvt.s32.f32 %v560
        %v601 = vcvt.s32.f32 %v561
        %v602 = vcvt.s32.f32 %v562
        %v603 = vcvt.s32.f32 %v563
        %v604 = vcvt.s32.f32 %v564
        %v605 = vcvt.s32.f32 %v565
        %v606 = vcvt.s32.f32 %v566
        %v607 = vcvt.s32.f32 %v567
        %v608 = vcvt.s32.f32 %v568
        %v609 = vcvt.s32.f32 %v569
        %v610 = vcvt.s32.f32 %v570
        %v611 = vcvt.s32.f32 %v571
        %v612 = vcvt.s32.f32 %v572
        %v613 = vcvt.s32.f32 %v573
        %v614 = vcvt.s32.f32 %v574
        %v615 = vcvt.s32.f32 %v575
        %v616 = vcvt.s32.f32 %v576
        %v617 = vlaneseq
        %v618 = vshrl.u32 %v617, 7
        %v619 = vadd.s32 %v618, 8
        %v620 = vadd.s32 %v618, 16
        %v621 = vadd.s32 %v618, 24
        %v622 = vadd.s32 %v618, 32
        %vm623 = vcmp.lt.s32.totalorder %v618, 35
        %vm624 = vcmp.lt.s32.totalorder %v619, 35
        %vm625 = vcmp.lt.s32.totalorder %v620, 35
        %vm626 = vcmp.lt.s32.totalorder %v621, 35
        %vm627 = vcmp.lt.s32.totalorder %v622, 35
        %v628 = vld [vmem:[%s1] sm:$0x7f]
        %v629 = vld [vmem:[%s2] sm:$0x1]
        %v631 = vlaneseq
        %v632 = vshrl.u32 %v631, 7
        %v633 = vsub.s32 0, %v632
        %v634 = vrot.slane %v629, %v633
        %v637 = vsel %vm376, %v336, 0
        %v640 = vsel %vm376, %v337, 0
        %v643 = vsel %vm376, %v338, 0
        %v646 = vsel %vm376, %v339, 0
        %v649 = vsel %vm376, %v340, 0
        %v652 = vsel %vm376, %v341, 0
        %v655 = vsel %vm376, %v342, 0
        %v658 = vsel %vm376, %v343, 0
        %v661 = vsel %vm376, %v344, 0
        %v664 = vsel %vm376, %v345, 0
        %v667 = vsel %vm376, %v346, 0
        %v670 = vsel %vm376, %v347, 0
        %v673 = vsel %vm376, %v348, 0
        %v676 = vsel %vm376, %v349, 0
        %v679 = vsel %vm376, %v350, 0
        %v682 = vsel %vm376, %v351, 0
        %v685 = vsel %vm376, %v352, 0
        %v688 = vsel %vm376, %v353, 0
        %v691 = vsel %vm376, %v354, 0
        %v694 = vsel %vm376, %v355, 0
        %v697 = vsel %vm376, %v356, 0
        %v700 = vsel %vm376, %v357, 0
        %v703 = vsel %vm376, %v358, 0
        %v706 = vsel %vm376, %v359, 0
        %v709 = vsel %vm376, %v360, 0
        %v712 = vsel %vm376, %v361, 0
        %v715 = vsel %vm376, %v362, 0
        %v718 = vsel %vm376, %v363, 0
        %v721 = vsel %vm376, %v364, 0
        %v724 = vsel %vm376, %v365, 0
        %v727 = vsel %vm376, %v366, 0
        %v730 = vsel %vm376, %v367, 0
        %v733 = vsel %vm376, %v368, 0
        %v736 = vsel %vm376, %v369, 0
        %v739 = vsel %vm376, %v370, 0
        %v742 = vsel %vm376, %v371, 0
        %v745 = vsel %vm376, %v372, 0
        %v748 = vsel %vm376, %v373, 0
        %v751 = vsel %vm376, %v374, 0
        %v754 = vsel %vm376, %v375, 0
        %vm756 = vcmask 1046528
        %v758 = vsel %vm756, %v628, 0
        %760 = vmatprep.subr.mxu0 0.0
        %761 = vmatpush1.msra.mxu0 0.0
        %762 = vmatprep.subr.mxu0 0.0
        %763 = vmatpush1.msra.mxu0 0.0
        %764 = vmatprep.subr.mxu0 0.0
        %765 = vmatpush1.msra.mxu0 0.0
        %766 = vmatprep.subr.mxu0 0.0
        %767 = vmatpush1.msra.mxu0 0.0
        %768 = vmatprep.subr.mxu0 0.0
        %769 = vmatpush1.msra.mxu0 0.0
        %770 = vmatprep.subr.mxu0 0.0
        %771 = vmatpush1.msra.mxu0 0.0
        %772 = vmatprep.subr.mxu0 0.0
        %773 = vmatpush1.msra.mxu0 0.0
        %774 = vmatprep.subr.mxu0 0.0
        %775 = vmatpush1.msra.mxu0 0.0
        %776 = vmatprep.subr.mxu0 0.0
        %777 = vmatpush1.msra.mxu0 0.0
        %778 = vmatprep.subr.mxu0 0.0
        %779 = vmatpush1.msra.mxu0 0.0
        %780 = vmatprep.subr.mxu0 0.0
        %781 = vmatpush1.msra.mxu0 0.0
        %782 = vmatprep.subr.mxu0 0.0
        %783 = vmatpush1.msra.mxu0 0.0
        %784 = vmatprep.subr.mxu0 0.0
        %785 = vmatpush1.msra.mxu0 0.0
        %786 = vmatprep.subr.mxu0 0.0
        %787 = vmatpush1.msra.mxu0 0.0
        %788 = vmatprep.subr.mxu0 0.0
        %789 = vmatpush1.msra.mxu0 0.0
        %790 = vmatprep.subr.mxu0 0.0
        %791 = vmatpush1.msra.mxu0 %v758
        %792 = vmatprep.subr.mxu0 0.0
        %793 = vmatpush2.msra.mxu0 0.0
        %794 = vmatprep.subr.mxu0 0.0
        %795 = vmatpush2.msra.mxu0 0.0
        %796 = vmatprep.subr.mxu0 0.0
        %797 = vmatpush2.msra.mxu0 0.0
        %798 = vmatprep.subr.mxu0 0.0
        %799 = vmatpush2.msra.mxu0 0.0
        %800 = vmatprep.subr.mxu0 0.0
        %801 = vmatpush2.msra.mxu0 0.0
        %802 = vmatprep.subr.mxu0 0.0
        %803 = vmatpush2.msra.mxu0 0.0
        %804 = vmatprep.subr.mxu0 0.0
        %805 = vmatpush2.msra.mxu0 0.0
        %806 = vmatprep.subr.mxu0 0.0
        %807 = vmatpush2.msra.mxu0 0.0
        %808 = vmatprep.subr.mxu0 0.0
        %809 = vmatpush2.msra.mxu0 0.0
        %810 = vmatprep.subr.mxu0 0.0
        %811 = vmatpush2.msra.mxu0 0.0
        %812 = vmatprep.subr.mxu0 0.0
        %813 = vmatpush2.msra.mxu0 0.0
        %814 = vmatprep.subr.mxu0 0.0
        %815 = vmatpush2.msra.mxu0 0.0
        %816 = vmatprep.subr.mxu0 0.0
        %817 = vmatpush2.msra.mxu0 0.0
        %818 = vmatprep.subr.mxu0 0.0
        %819 = vmatpush2.msra.mxu0 0.0
        %820 = vmatprep.subr.mxu0 0.0
        %821 = vmatpush2.msra.mxu0 0.0
        %822 = vmatprep.subr.mxu0 0.0
        %823 = vmatpush2.msra.mxu0 0.0
        %824 = vmatprep.mubr.f32.mxu0 0.0
        %825 = vmatmul.mubr.f32.gmra.mxu0 %v637
        %v826 = vpop.f32.mrf.mxu0
        %v827 = vadd.f32 %v634, %v826
        %v828 = vpop.f32.mrf.mxu0
        %829 = vmatprep.mubr.f32.mxu0 0.0
        %830 = vmatmul.mubr.f32.gmra.mxu0 %v640
        %v831 = vpop.f32.mrf.mxu0
        %v832 = vadd.f32 %v634, %v831
        %v833 = vpop.f32.mrf.mxu0
        %834 = vmatprep.mubr.f32.mxu0 0.0
        %835 = vmatmul.mubr.f32.gmra.mxu0 %v643
        %v836 = vpop.f32.mrf.mxu0
        %v837 = vadd.f32 %v634, %v836
        %v838 = vpop.f32.mrf.mxu0
        %839 = vmatprep.mubr.f32.mxu0 0.0
        %840 = vmatmul.mubr.f32.gmra.mxu0 %v646
        %v841 = vpop.f32.mrf.mxu0
        %v842 = vadd.f32 %v634, %v841
        %v843 = vpop.f32.mrf.mxu0
        %844 = vmatprep.mubr.f32.mxu0 0.0
        %845 = vmatmul.mubr.f32.gmra.mxu0 %v649
        %v846 = vpop.f32.mrf.mxu0
        %v847 = vadd.f32 %v634, %v846
        %v848 = vpop.f32.mrf.mxu0
        %849 = vmatprep.mubr.f32.mxu0 0.0
        %850 = vmatmul.mubr.f32.gmra.mxu0 %v652
        %v851 = vpop.f32.mrf.mxu0
        %v852 = vadd.f32 %v634, %v851
        %v853 = vpop.f32.mrf.mxu0
        %854 = vmatprep.mubr.f32.mxu0 0.0
        %855 = vmatmul.mubr.f32.gmra.mxu0 %v655
        %v856 = vpop.f32.mrf.mxu0
        %v857 = vadd.f32 %v634, %v856
        %v858 = vpop.f32.mrf.mxu0
        %859 = vmatprep.mubr.f32.mxu0 0.0
        %860 = vmatmul.mubr.f32.gmra.mxu0 %v658
        %v861 = vpop.f32.mrf.mxu0
        %v862 = vadd.f32 %v634, %v861
        %v863 = vpop.f32.mrf.mxu0
        %864 = vmatprep.mubr.f32.mxu0 0.0
        %865 = vmatmul.mubr.f32.gmra.mxu0 %v661
        %v866 = vpop.f32.mrf.mxu0
        %v867 = vadd.f32 %v634, %v866
        %v868 = vpop.f32.mrf.mxu0
        %869 = vmatprep.mubr.f32.mxu0 0.0
        %870 = vmatmul.mubr.f32.gmra.mxu0 %v664
        %v871 = vpop.f32.mrf.mxu0
        %v872 = vadd.f32 %v634, %v871
        %v873 = vpop.f32.mrf.mxu0
        %874 = vmatprep.mubr.f32.mxu0 0.0
        %875 = vmatmul.mubr.f32.gmra.mxu0 %v667
        %v876 = vpop.f32.mrf.mxu0
        %v877 = vadd.f32 %v634, %v876
        %v878 = vpop.f32.mrf.mxu0
        %879 = vmatprep.mubr.f32.mxu0 0.0
        %880 = vmatmul.mubr.f32.gmra.mxu0 %v670
        %v881 = vpop.f32.mrf.mxu0
        %v882 = vadd.f32 %v634, %v881
        %v883 = vpop.f32.mrf.mxu0
        %884 = vmatprep.mubr.f32.mxu0 0.0
        %885 = vmatmul.mubr.f32.gmra.mxu0 %v673
        %v886 = vpop.f32.mrf.mxu0
        %v887 = vadd.f32 %v634, %v886
        %v888 = vpop.f32.mrf.mxu0
        %889 = vmatprep.mubr.f32.mxu0 0.0
        %890 = vmatmul.mubr.f32.gmra.mxu0 %v676
        %v891 = vpop.f32.mrf.mxu0
        %v892 = vadd.f32 %v634, %v891
        %v893 = vpop.f32.mrf.mxu0
        %894 = vmatprep.mubr.f32.mxu0 0.0
        %895 = vmatmul.mubr.f32.gmra.mxu0 %v679
        %v896 = vpop.f32.mrf.mxu0
        %v897 = vadd.f32 %v634, %v896
        %v898 = vpop.f32.mrf.mxu0
        %899 = vmatprep.mubr.f32.mxu0 0.0
        %900 = vmatmul.mubr.f32.gmra.mxu0 %v682
        %v901 = vpop.f32.mrf.mxu0
        %v902 = vadd.f32 %v634, %v901
        %v903 = vpop.f32.mrf.mxu0
        %904 = vmatprep.mubr.f32.mxu0 0.0
        %905 = vmatmul.mubr.f32.gmra.mxu0 %v685
        %v906 = vpop.f32.mrf.mxu0
        %v907 = vadd.f32 %v634, %v906
        %v908 = vpop.f32.mrf.mxu0
        %909 = vmatprep.mubr.f32.mxu0 0.0
        %910 = vmatmul.mubr.f32.gmra.mxu0 %v688
        %v911 = vpop.f32.mrf.mxu0
        %v912 = vadd.f32 %v634, %v911
        %v913 = vpop.f32.mrf.mxu0
        %914 = vmatprep.mubr.f32.mxu0 0.0
        %915 = vmatmul.mubr.f32.gmra.mxu0 %v691
        %v916 = vpop.f32.mrf.mxu0
        %v917 = vadd.f32 %v634, %v916
        %v918 = vpop.f32.mrf.mxu0
        %919 = vmatprep.mubr.f32.mxu0 0.0
        %920 = vmatmul.mubr.f32.gmra.mxu0 %v694
        %v921 = vpop.f32.mrf.mxu0
        %v922 = vadd.f32 %v634, %v921
        %v923 = vpop.f32.mrf.mxu0
        %924 = vmatprep.mubr.f32.mxu0 0.0
        %925 = vmatmul.mubr.f32.gmra.mxu0 %v697
        %v926 = vpop.f32.mrf.mxu0
        %v927 = vadd.f32 %v634, %v926
        %v928 = vpop.f32.mrf.mxu0
        %929 = vmatprep.mubr.f32.mxu0 0.0
        %930 = vmatmul.mubr.f32.gmra.mxu0 %v700
        %v931 = vpop.f32.mrf.mxu0
        %v932 = vadd.f32 %v634, %v931
        %v933 = vpop.f32.mrf.mxu0
        %934 = vmatprep.mubr.f32.mxu0 0.0
        %935 = vmatmul.mubr.f32.gmra.mxu0 %v703
        %v936 = vpop.f32.mrf.mxu0
        %v937 = vadd.f32 %v634, %v936
        %v938 = vpop.f32.mrf.mxu0
        %939 = vmatprep.mubr.f32.mxu0 0.0
        %940 = vmatmul.mubr.f32.gmra.mxu0 %v706
        %v941 = vpop.f32.mrf.mxu0
        %v942 = vadd.f32 %v634, %v941
        %v943 = vpop.f32.mrf.mxu0
        %944 = vmatprep.mubr.f32.mxu0 0.0
        %945 = vmatmul.mubr.f32.gmra.mxu0 %v709
        %v946 = vpop.f32.mrf.mxu0
        %v947 = vadd.f32 %v634, %v946
        %v948 = vpop.f32.mrf.mxu0
        %949 = vmatprep.mubr.f32.mxu0 0.0
        %950 = vmatmul.mubr.f32.gmra.mxu0 %v712
        %v951 = vpop.f32.mrf.mxu0
        %v952 = vadd.f32 %v634, %v951
        %v953 = vpop.f32.mrf.mxu0
        %954 = vmatprep.mubr.f32.mxu0 0.0
        %955 = vmatmul.mubr.f32.gmra.mxu0 %v715
        %v956 = vpop.f32.mrf.mxu0
        %v957 = vadd.f32 %v634, %v956
        %v958 = vpop.f32.mrf.mxu0
        %959 = vmatprep.mubr.f32.mxu0 0.0
        %960 = vmatmul.mubr.f32.gmra.mxu0 %v718
        %v961 = vpop.f32.mrf.mxu0
        %v962 = vadd.f32 %v634, %v961
        %v963 = vpop.f32.mrf.mxu0
        %964 = vmatprep.mubr.f32.mxu0 0.0
        %965 = vmatmul.mubr.f32.gmra.mxu0 %v721
        %v966 = vpop.f32.mrf.mxu0
        %v967 = vadd.f32 %v634, %v966
        %v968 = vpop.f32.mrf.mxu0
        %969 = vmatprep.mubr.f32.mxu0 0.0
        %970 = vmatmul.mubr.f32.gmra.mxu0 %v724
        %v971 = vpop.f32.mrf.mxu0
        %v972 = vadd.f32 %v634, %v971
        %v973 = vpop.f32.mrf.mxu0
        %974 = vmatprep.mubr.f32.mxu0 0.0
        %975 = vmatmul.mubr.f32.gmra.mxu0 %v727
        %v976 = vpop.f32.mrf.mxu0
        %v977 = vadd.f32 %v634, %v976
        %v978 = vpop.f32.mrf.mxu0
        %979 = vmatprep.mubr.f32.mxu0 0.0
        %980 = vmatmul.mubr.f32.gmra.mxu0 %v730
        %v981 = vpop.f32.mrf.mxu0
        %v982 = vadd.f32 %v634, %v981
        %v983 = vpop.f32.mrf.mxu0
        %984 = vmatprep.mubr.f32.mxu0 0.0
        %985 = vmatmul.mubr.f32.gmra.mxu0 %v733
        %v986 = vpop.f32.mrf.mxu0
        %v987 = vadd.f32 %v634, %v986
        %v988 = vpop.f32.mrf.mxu0
        %989 = vmatprep.mubr.f32.mxu0 0.0
        %990 = vmatmul.mubr.f32.gmra.mxu0 %v736
        %v991 = vpop.f32.mrf.mxu0
        %v992 = vadd.f32 %v634, %v991
        %v993 = vpop.f32.mrf.mxu0
        %994 = vmatprep.mubr.f32.mxu0 0.0
        %995 = vmatmul.mubr.f32.gmra.mxu0 %v739
        %v996 = vpop.f32.mrf.mxu0
        %v997 = vadd.f32 %v634, %v996
        %v998 = vpop.f32.mrf.mxu0
        %999 = vmatprep.mubr.f32.mxu0 0.0
        %1000 = vmatmul.mubr.f32.gmra.mxu0 %v742
        %v1001 = vpop.f32.mrf.mxu0
        %v1002 = vadd.f32 %v634, %v1001
        %v1003 = vpop.f32.mrf.mxu0
        %1004 = vmatprep.mubr.f32.mxu0 0.0
        %1005 = vmatmul.mubr.f32.gmra.mxu0 %v745
        %v1006 = vpop.f32.mrf.mxu0
        %v1007 = vadd.f32 %v634, %v1006
        %v1008 = vpop.f32.mrf.mxu0
        %1009 = vmatprep.mubr.f32.mxu0 0.0
        %1010 = vmatmul.mubr.f32.gmra.mxu0 %v748
        %v1011 = vpop.f32.mrf.mxu0
        %v1012 = vadd.f32 %v634, %v1011
        %v1013 = vpop.f32.mrf.mxu0
        %1014 = vmatprep.mubr.f32.mxu0 0.0
        %1015 = vmatmul.mubr.f32.gmra.mxu0 %v751
        %v1016 = vpop.f32.mrf.mxu0
        %v1017 = vadd.f32 %v634, %v1016
        %v1018 = vpop.f32.mrf.mxu0
        %1019 = vmatprep.mubr.f32.mxu0 0.0
        %1020 = vmatmul.mubr.f32.gmra.mxu0 %v754
        %v1021 = vpop.f32.mrf.mxu0
        %v1022 = vadd.f32 %v634, %v1021
        %v1023 = vpop.f32.mrf.mxu0
        %1024 = vdwg.mxu0
        %v1025 = vmax.f32 %v827, 0.0
        %v1026 = vmax.f32 %v832, 0.0
        %v1027 = vmax.f32 %v837, 0.0
        %v1028 = vmax.f32 %v842, 0.0
        %v1029 = vmax.f32 %v847, 0.0
        %v1030 = vmax.f32 %v852, 0.0
        %v1031 = vmax.f32 %v857, 0.0
        %v1032 = vmax.f32 %v862, 0.0
        %v1033 = vmax.f32 %v867, 0.0
        %v1034 = vmax.f32 %v872, 0.0
        %v1035 = vmax.f32 %v877, 0.0
        %v1036 = vmax.f32 %v882, 0.0
        %v1037 = vmax.f32 %v887, 0.0
        %v1038 = vmax.f32 %v892, 0.0
        %v1039 = vmax.f32 %v897, 0.0
        %v1040 = vmax.f32 %v902, 0.0
        %v1041 = vmax.f32 %v907, 0.0
        %v1042 = vmax.f32 %v912, 0.0
        %v1043 = vmax.f32 %v917, 0.0
        %v1044 = vmax.f32 %v922, 0.0
        %v1045 = vmax.f32 %v927, 0.0
        %v1046 = vmax.f32 %v932, 0.0
        %v1047 = vmax.f32 %v937, 0.0
        %v1048 = vmax.f32 %v942, 0.0
        %v1049 = vmax.f32 %v947, 0.0
        %v1050 = vmax.f32 %v952, 0.0
        %v1051 = vmax.f32 %v957, 0.0
        %v1052 = vmax.f32 %v962, 0.0
        %v1053 = vmax.f32 %v967, 0.0
        %v1054 = vmax.f32 %v972, 0.0
        %v1055 = vmax.f32 %v977, 0.0
        %v1056 = vmax.f32 %v982, 0.0
        %v1057 = vmax.f32 %v987, 0.0
        %v1058 = vmax.f32 %v992, 0.0
        %v1059 = vmax.f32 %v997, 0.0
        %v1060 = vmax.f32 %v1002, 0.0
        %v1061 = vmax.f32 %v1007, 0.0
        %v1062 = vmax.f32 %v1012, 0.0
        %v1063 = vmax.f32 %v1017, 0.0
        %v1064 = vmax.f32 %v1022, 0.0
        %v1065 = vsel %vm623, 1, 0
        %v1066 = vsel %vm624, 1, 0
        %v1067 = vsel %vm625, 1, 0
        %v1068 = vsel %vm626, 1, 0
        %v1069 = vsel %vm627, 1, 0
        %vm1070 = vcmp.eq.s32.totalorder %v1065, 1
        %vm1071 = vcmp.eq.s32.totalorder %v1066, 1
        %vm1072 = vcmp.eq.s32.totalorder %v1067, 1
        %vm1073 = vcmp.eq.s32.totalorder %v1068, 1
        %vm1074 = vcmp.eq.s32.totalorder %v1069, 1
        %v1075 = vsel %vm1070, %v1025, 0.0
        %v1076 = vsel %vm1071, %v1026, 0.0
        %v1077 = vsel %vm1072, %v1027, 0.0
        %v1078 = vsel %vm1073, %v1028, 0.0
        %v1079 = vsel %vm1074, %v1029, 0.0
        %v1080 = vsel %vm1070, %v1030, 0.0
        %v1081 = vsel %vm1071, %v1031, 0.0
        %v1082 = vsel %vm1072, %v1032, 0.0
        %v1083 = vsel %vm1073, %v1033, 0.0
        %v1084 = vsel %vm1074, %v1034, 0.0
        %v1085 = vsel %vm1070, %v1035, 0.0
        %v1086 = vsel %vm1071, %v1036, 0.0
        %v1087 = vsel %vm1072, %v1037, 0.0
        %v1088 = vsel %vm1073, %v1038, 0.0
        %v1089 = vsel %vm1074, %v1039, 0.0
        %v1090 = vsel %vm1070, %v1040, 0.0
        %v1091 = vsel %vm1071, %v1041, 0.0
        %v1092 = vsel %vm1072, %v1042, 0.0
        %v1093 = vsel %vm1073, %v1043, 0.0
        %v1094 = vsel %vm1074, %v1044, 0.0
        %v1095 = vsel %vm1070, %v1045, 0.0
        %v1096 = vsel %vm1071, %v1046, 0.0
        %v1097 = vsel %vm1072, %v1047, 0.0
        %v1098 = vsel %vm1073, %v1048, 0.0
        %v1099 = vsel %vm1074, %v1049, 0.0
        %v1100 = vsel %vm1070, %v1050, 0.0
        %v1101 = vsel %vm1071, %v1051, 0.0
        %v1102 = vsel %vm1072, %v1052, 0.0
        %v1103 = vsel %vm1073, %v1053, 0.0
        %v1104 = vsel %vm1074, %v1054, 0.0
        %v1105 = vsel %vm1070, %v1055, 0.0
        %v1106 = vsel %vm1071, %v1056, 0.0
        %v1107 = vsel %vm1072, %v1057, 0.0
        %v1108 = vsel %vm1073, %v1058, 0.0
        %v1109 = vsel %vm1074, %v1059, 0.0
        %v1110 = vsel %vm1070, %v1060, 0.0
        %v1111 = vsel %vm1071, %v1061, 0.0
        %v1112 = vsel %vm1072, %v1062, 0.0
        %v1113 = vsel %vm1073, %v1063, 0.0
        %v1114 = vsel %vm1074, %v1064, 0.0
        %vm1115 = vcmask 130048
        %v1116 = vsel %vm1115, %v1075, -inf
        %v1117 = vsel %vm1115, %v1076, -inf
        %v1118 = vmax.f32 %v1116, %v1117
        %v1119 = vsel %vm1115, %v1077, -inf
        %v1120 = vmax.f32 %v1118, %v1119
        %v1121 = vsel %vm1115, %v1078, -inf
        %v1122 = vmax.f32 %v1120, %v1121
        %v1123 = vsel %vm1115, %v1079, -inf
        %v1124 = vmax.f32 %v1122, %v1123
        %v1125 = vrot.slane %v1124, 4
        %v1126 = vmax.f32 %v1124, %v1125
        %v1127 = vrot.slane %v1126, 2
        %v1128 = vmax.f32 %v1126, %v1127
        %v1129 = vrot.slane %v1128, 1
        %v1130 = vmax.f32 %v1128, %v1129
        %v1131 = vsel %vm1115, %v1080, -inf
        %v1132 = vsel %vm1115, %v1081, -inf
        %v1133 = vmax.f32 %v1131, %v1132
        %v1134 = vsel %vm1115, %v1082, -inf
        %v1135 = vmax.f32 %v1133, %v1134
        %v1136 = vsel %vm1115, %v1083, -inf
        %v1137 = vmax.f32 %v1135, %v1136
        %v1138 = vsel %vm1115, %v1084, -inf
        %v1139 = vmax.f32 %v1137, %v1138
        %v1140 = vrot.slane %v1139, 4
        %v1141 = vmax.f32 %v1139, %v1140
        %v1142 = vrot.slane %v1141, 2
        %v1143 = vmax.f32 %v1141, %v1142
        %v1144 = vrot.slane %v1143, 1
        %v1145 = vmax.f32 %v1143, %v1144
        %v1146 = vsel %vm1115, %v1085, -inf
        %v1147 = vsel %vm1115, %v1086, -inf
        %v1148 = vmax.f32 %v1146, %v1147
        %v1149 = vsel %vm1115, %v1087, -inf
        %v1150 = vmax.f32 %v1148, %v1149
        %v1151 = vsel %vm1115, %v1088, -inf
        %v1152 = vmax.f32 %v1150, %v1151
        %v1153 = vsel %vm1115, %v1089, -inf
        %v1154 = vmax.f32 %v1152, %v1153
        %v1155 = vrot.slane %v1154, 4
        %v1156 = vmax.f32 %v1154, %v1155
        %v1157 = vrot.slane %v1156, 2
        %v1158 = vmax.f32 %v1156, %v1157
        %v1159 = vrot.slane %v1158, 1
        %v1160 = vmax.f32 %v1158, %v1159
        %v1161 = vsel %vm1115, %v1090, -inf
        %v1162 = vsel %vm1115, %v1091, -inf
        %v1163 = vmax.f32 %v1161, %v1162
        %v1164 = vsel %vm1115, %v1092, -inf
        %v1165 = vmax.f32 %v1163, %v1164
        %v1166 = vsel %vm1115, %v1093, -inf
        %v1167 = vmax.f32 %v1165, %v1166
        %v1168 = vsel %vm1115, %v1094, -inf
        %v1169 = vmax.f32 %v1167, %v1168
        %v1170 = vrot.slane %v1169, 4
        %v1171 = vmax.f32 %v1169, %v1170
        %v1172 = vrot.slane %v1171, 2
        %v1173 = vmax.f32 %v1171, %v1172
        %v1174 = vrot.slane %v1173, 1
        %v1175 = vmax.f32 %v1173, %v1174
        %v1176 = vsel %vm1115, %v1095, -inf
        %v1177 = vsel %vm1115, %v1096, -inf
        %v1178 = vmax.f32 %v1176, %v1177
        %v1179 = vsel %vm1115, %v1097, -inf
        %v1180 = vmax.f32 %v1178, %v1179
        %v1181 = vsel %vm1115, %v1098, -inf
        %v1182 = vmax.f32 %v1180, %v1181
        %v1183 = vsel %vm1115, %v1099, -inf
        %v1184 = vmax.f32 %v1182, %v1183
        %v1185 = vrot.slane %v1184, 4
        %v1186 = vmax.f32 %v1184, %v1185
        %v1187 = vrot.slane %v1186, 2
        %v1188 = vmax.f32 %v1186, %v1187
        %v1189 = vrot.slane %v1188, 1
        %v1190 = vmax.f32 %v1188, %v1189
        %v1191 = vsel %vm1115, %v1100, -inf
        %v1192 = vsel %vm1115, %v1101, -inf
        %v1193 = vmax.f32 %v1191, %v1192
        %v1194 = vsel %vm1115, %v1102, -inf
        %v1195 = vmax.f32 %v1193, %v1194
        %v1196 = vsel %vm1115, %v1103, -inf
        %v1197 = vmax.f32 %v1195, %v1196
        %v1198 = vsel %vm1115, %v1104, -inf
        %v1199 = vmax.f32 %v1197, %v1198
        %v1200 = vrot.slane %v1199, 4
        %v1201 = vmax.f32 %v1199, %v1200
        %v1202 = vrot.slane %v1201, 2
        %v1203 = vmax.f32 %v1201, %v1202
        %v1204 = vrot.slane %v1203, 1
        %v1205 = vmax.f32 %v1203, %v1204
        %v1206 = vsel %vm1115, %v1105, -inf
        %v1207 = vsel %vm1115, %v1106, -inf
        %v1208 = vmax.f32 %v1206, %v1207
        %v1209 = vsel %vm1115, %v1107, -inf
        %v1210 = vmax.f32 %v1208, %v1209
        %v1211 = vsel %vm1115, %v1108, -inf
        %v1212 = vmax.f32 %v1210, %v1211
        %v1213 = vsel %vm1115, %v1109, -inf
        %v1214 = vmax.f32 %v1212, %v1213
        %v1215 = vrot.slane %v1214, 4
        %v1216 = vmax.f32 %v1214, %v1215
        %v1217 = vrot.slane %v1216, 2
        %v1218 = vmax.f32 %v1216, %v1217
        %v1219 = vrot.slane %v1218, 1
        %v1220 = vmax.f32 %v1218, %v1219
        %v1221 = vsel %vm1115, %v1110, -inf
        %v1222 = vsel %vm1115, %v1111, -inf
        %v1223 = vmax.f32 %v1221, %v1222
        %v1224 = vsel %vm1115, %v1112, -inf
        %v1225 = vmax.f32 %v1223, %v1224
        %v1226 = vsel %vm1115, %v1113, -inf
        %v1227 = vmax.f32 %v1225, %v1226
        %v1228 = vsel %vm1115, %v1114, -inf
        %v1229 = vmax.f32 %v1227, %v1228
        %v1230 = vrot.slane %v1229, 4
        %v1231 = vmax.f32 %v1229, %v1230
        %v1232 = vrot.slane %v1231, 2
        %v1233 = vmax.f32 %v1231, %v1232
        %v1234 = vrot.slane %v1233, 1
        %v1235 = vmax.f32 %v1233, %v1234
        %v1236 = vld [vmem:[%s4] sm:$0xff]
        %v1237 = vld [vmem:[%s4 + $0x8] sm:$0xff]
        %vm1246 = vcmask 1041409
        %v1247 = vsel %vm1246, %v1145, %v1130
        %vm1248 = vcmask 1042434
        %v1249 = vsel %vm1248, %v1160, %v1247
        %vm1250 = vcmask 1043459
        %v1251 = vsel %vm1250, %v1175, %v1249
        %vm1252 = vcmask 1044484
        %v1253 = vsel %vm1252, %v1190, %v1251
        %vm1254 = vcmask 1045509
        %v1255 = vsel %vm1254, %v1205, %v1253
        %vm1256 = vcmask 1046534
        %v1257 = vsel %vm1256, %v1220, %v1255
        %vm1258 = vcmask 1047559
        %v1259 = vsel %vm1258, %v1235, %v1257
        %v1260 = vsel %vm1115, %v1259, 0
        %1262 = vmatprep.subr.mxu0 0.0
        %1263 = vmatpush1.msra.mxu0 0.0
        %1264 = vmatprep.subr.mxu0 0.0
        %1265 = vmatpush1.msra.mxu0 0.0
        %1266 = vmatprep.subr.mxu0 0.0
        %1267 = vmatpush1.msra.mxu0 0.0
        %1268 = vmatprep.subr.mxu0 0.0
        %1269 = vmatpush1.msra.mxu0 0.0
        %1270 = vmatprep.subr.mxu0 0.0
        %1271 = vmatpush1.msra.mxu0 0.0
        %1272 = vmatprep.subr.mxu0 0.0
        %1273 = vmatpush1.msra.mxu0 0.0
        %1274 = vmatprep.subr.mxu0 0.0
        %1275 = vmatpush1.msra.mxu0 0.0
        %1276 = vmatprep.subr.mxu0 0.0
        %1277 = vmatpush1.msra.mxu0 0.0
        %1278 = vmatprep.subr.mxu0 0.0
        %1279 = vmatpush1.msra.mxu0 0.0
        %1280 = vmatprep.subr.mxu0 0.0
        %1281 = vmatpush1.msra.mxu0 0.0
        %1282 = vmatprep.subr.mxu0 0.0
        %1283 = vmatpush1.msra.mxu0 0.0
        %1284 = vmatprep.subr.mxu0 0.0
        %1285 = vmatpush1.msra.mxu0 0.0
        %1286 = vmatprep.subr.mxu0 0.0
        %1287 = vmatpush1.msra.mxu0 0.0
        %1288 = vmatprep.subr.mxu0 0.0
        %1289 = vmatpush1.msra.mxu0 0.0
        %1290 = vmatprep.subr.mxu0 0.0
        %1291 = vmatpush1.msra.mxu0 %v1237
        %1292 = vmatprep.subr.mxu0 0.0
        %1293 = vmatpush1.msra.mxu0 %v1236
        %1294 = vmatprep.subr.mxu0 0.0
        %1295 = vmatpush2.msra.mxu0 0.0
        %1296 = vmatprep.subr.mxu0 0.0
        %1297 = vmatpush2.msra.mxu0 0.0
        %1298 = vmatprep.subr.mxu0 0.0
        %1299 = vmatpush2.msra.mxu0 0.0
        %1300 = vmatprep.subr.mxu0 0.0
        %1301 = vmatpush2.msra.mxu0 0.0
        %1302 = vmatprep.subr.mxu0 0.0
        %1303 = vmatpush2.msra.mxu0 0.0
        %1304 = vmatprep.subr.mxu0 0.0
        %1305 = vmatpush2.msra.mxu0 0.0
        %1306 = vmatprep.subr.mxu0 0.0
        %1307 = vmatpush2.msra.mxu0 0.0
        %1308 = vmatprep.subr.mxu0 0.0
        %1309 = vmatpush2.msra.mxu0 0.0
        %1310 = vmatprep.subr.mxu0 0.0
        %1311 = vmatpush2.msra.mxu0 0.0
        %1312 = vmatprep.subr.mxu0 0.0
        %1313 = vmatpush2.msra.mxu0 0.0
        %1314 = vmatprep.subr.mxu0 0.0
        %1315 = vmatpush2.msra.mxu0 0.0
        %1316 = vmatprep.subr.mxu0 0.0
        %1317 = vmatpush2.msra.mxu0 0.0
        %1318 = vmatprep.subr.mxu0 0.0
        %1319 = vmatpush2.msra.mxu0 0.0
        %1320 = vmatprep.subr.mxu0 0.0
        %1321 = vmatpush2.msra.mxu0 0.0
        %1322 = vmatprep.subr.mxu0 0.0
        %1323 = vmatpush2.msra.mxu0 0.0
        %1324 = vmatprep.subr.mxu0 0.0
        %1325 = vmatpush2.msra.mxu0 0.0
        %1326 = vmatprep.mubr.f32.mxu0 0.0
        %1327 = vmatmul.mubr.f32.gmra.mxu0 %v1260
        %v1328 = vpop.f32.mrf.mxu0
        %v1329 = vadd.f32 0.0, %v1328
        %v1330 = vpop.f32.mrf.mxu0
        %1331 = vdwg.mxu0
        %v1332 = vld [vmem:[%s3] sm:$0xff]
        %v1333 = vld [vmem:[%s3 + $0x8] sm:$0xff]
        %v1335 = vsel %vm1115, %v1025, 0
        %v1338 = vsel %vm1115, %v1026, 0
        %v1341 = vsel %vm1115, %v1027, 0
        %v1344 = vsel %vm1115, %v1028, 0
        %v1347 = vsel %vm1115, %v1029, 0
        %v1350 = vsel %vm1115, %v1030, 0
        %v1353 = vsel %vm1115, %v1031, 0
        %v1356 = vsel %vm1115, %v1032, 0
        %v1359 = vsel %vm1115, %v1033, 0
        %v1362 = vsel %vm1115, %v1034, 0
        %v1365 = vsel %vm1115, %v1035, 0
        %v1368 = vsel %vm1115, %v1036, 0
        %v1371 = vsel %vm1115, %v1037, 0
        %v1374 = vsel %vm1115, %v1038, 0
        %v1377 = vsel %vm1115, %v1039, 0
        %v1380 = vsel %vm1115, %v1040, 0
        %v1383 = vsel %vm1115, %v1041, 0
        %v1386 = vsel %vm1115, %v1042, 0
        %v1389 = vsel %vm1115, %v1043, 0
        %v1392 = vsel %vm1115, %v1044, 0
        %v1395 = vsel %vm1115, %v1045, 0
        %v1398 = vsel %vm1115, %v1046, 0
        %v1401 = vsel %vm1115, %v1047, 0
        %v1404 = vsel %vm1115, %v1048, 0
        %v1407 = vsel %vm1115, %v1049, 0
        %v1410 = vsel %vm1115, %v1050, 0
        %v1413 = vsel %vm1115, %v1051, 0
        %v1416 = vsel %vm1115, %v1052, 0
        %v1419 = vsel %vm1115, %v1053, 0
        %v1422 = vsel %vm1115, %v1054, 0
        %v1425 = vsel %vm1115, %v1055, 0
        %v1428 = vsel %vm1115, %v1056, 0
        %v1431 = vsel %vm1115, %v1057, 0
        %v1434 = vsel %vm1115, %v1058, 0
        %v1437 = vsel %vm1115, %v1059, 0
        %v1440 = vsel %vm1115, %v1060, 0
        %v1443 = vsel %vm1115, %v1061, 0
        %v1446 = vsel %vm1115, %v1062, 0
        %v1449 = vsel %vm1115, %v1063, 0
        %v1452 = vsel %vm1115, %v1064, 0
        %1454 = vmatprep.subr.mxu0 0.0
        %1455 = vmatpush1.msra.mxu0 0.0
        %1456 = vmatprep.subr.mxu0 0.0
        %1457 = vmatpush1.msra.mxu0 0.0
        %1458 = vmatprep.subr.mxu0 0.0
        %1459 = vmatpush1.msra.mxu0 0.0
        %1460 = vmatprep.subr.mxu0 0.0
        %1461 = vmatpush1.msra.mxu0 0.0
        %1462 = vmatprep.subr.mxu0 0.0
        %1463 = vmatpush1.msra.mxu0 0.0
        %1464 = vmatprep.subr.mxu0 0.0
        %1465 = vmatpush1.msra.mxu0 0.0
        %1466 = vmatprep.subr.mxu0 0.0
        %1467 = vmatpush1.msra.mxu0 0.0
        %1468 = vmatprep.subr.mxu0 0.0
        %1469 = vmatpush1.msra.mxu0 0.0
        %1470 = vmatprep.subr.mxu0 0.0
        %1471 = vmatpush1.msra.mxu0 0.0
        %1472 = vmatprep.subr.mxu0 0.0
        %1473 = vmatpush1.msra.mxu0 0.0
        %1474 = vmatprep.subr.mxu0 0.0
        %1475 = vmatpush1.msra.mxu0 0.0
        %1476 = vmatprep.subr.mxu0 0.0
        %1477 = vmatpush1.msra.mxu0 0.0
        %1478 = vmatprep.subr.mxu0 0.0
        %1479 = vmatpush1.msra.mxu0 0.0
        %1480 = vmatprep.subr.mxu0 0.0
        %1481 = vmatpush1.msra.mxu0 0.0
        %1482 = vmatprep.subr.mxu0 0.0
        %1483 = vmatpush1.msra.mxu0 %v1333
        %1484 = vmatprep.subr.mxu0 0.0
        %1485 = vmatpush1.msra.mxu0 %v1332
        %1486 = vmatprep.subr.mxu0 0.0
        %1487 = vmatpush2.msra.mxu0 0.0
        %1488 = vmatprep.subr.mxu0 0.0
        %1489 = vmatpush2.msra.mxu0 0.0
        %1490 = vmatprep.subr.mxu0 0.0
        %1491 = vmatpush2.msra.mxu0 0.0
        %1492 = vmatprep.subr.mxu0 0.0
        %1493 = vmatpush2.msra.mxu0 0.0
        %1494 = vmatprep.subr.mxu0 0.0
        %1495 = vmatpush2.msra.mxu0 0.0
        %1496 = vmatprep.subr.mxu0 0.0
        %1497 = vmatpush2.msra.mxu0 0.0
        %1498 = vmatprep.subr.mxu0 0.0
        %1499 = vmatpush2.msra.mxu0 0.0
        %1500 = vmatprep.subr.mxu0 0.0
        %1501 = vmatpush2.msra.mxu0 0.0
        %1502 = vmatprep.subr.mxu0 0.0
        %1503 = vmatpush2.msra.mxu0 0.0
        %1504 = vmatprep.subr.mxu0 0.0
        %1505 = vmatpush2.msra.mxu0 0.0
        %1506 = vmatprep.subr.mxu0 0.0
        %1507 = vmatpush2.msra.mxu0 0.0
        %1508 = vmatprep.subr.mxu0 0.0
        %1509 = vmatpush2.msra.mxu0 0.0
        %1510 = vmatprep.subr.mxu0 0.0
        %1511 = vmatpush2.msra.mxu0 0.0
        %1512 = vmatprep.subr.mxu0 0.0
        %1513 = vmatpush2.msra.mxu0 0.0
        %1514 = vmatprep.subr.mxu0 0.0
        %1515 = vmatpush2.msra.mxu0 0.0
        %1516 = vmatprep.subr.mxu0 0.0
        %1517 = vmatpush2.msra.mxu0 0.0
        %1518 = vmatprep.mubr.f32.mxu0 0.0
        %1519 = vmatmul.mubr.f32.gmra.mxu0 %v1335
        %v1520 = vpop.f32.mrf.mxu0
        %v1521 = vadd.f32 0.0, %v1520
        %v1522 = vpop.f32.mrf.mxu0
        %1523 = vmatprep.mubr.f32.mxu0 0.0
        %1524 = vmatmul.mubr.f32.gmra.mxu0 %v1338
        %v1525 = vpop.f32.mrf.mxu0
        %v1526 = vadd.f32 0.0, %v1525
        %v1527 = vpop.f32.mrf.mxu0
        %1528 = vmatprep.mubr.f32.mxu0 0.0
        %1529 = vmatmul.mubr.f32.gmra.mxu0 %v1341
        %v1530 = vpop.f32.mrf.mxu0
        %v1531 = vadd.f32 0.0, %v1530
        %v1532 = vpop.f32.mrf.mxu0
        %1533 = vmatprep.mubr.f32.mxu0 0.0
        %1534 = vmatmul.mubr.f32.gmra.mxu0 %v1344
        %v1535 = vpop.f32.mrf.mxu0
        %v1536 = vadd.f32 0.0, %v1535
        %v1537 = vpop.f32.mrf.mxu0
        %1538 = vmatprep.mubr.f32.mxu0 0.0
        %1539 = vmatmul.mubr.f32.gmra.mxu0 %v1347
        %v1540 = vpop.f32.mrf.mxu0
        %v1541 = vadd.f32 0.0, %v1540
        %v1542 = vpop.f32.mrf.mxu0
        %1543 = vmatprep.mubr.f32.mxu0 0.0
        %1544 = vmatmul.mubr.f32.gmra.mxu0 %v1350
        %v1545 = vpop.f32.mrf.mxu0
        %v1546 = vadd.f32 0.0, %v1545
        %v1547 = vpop.f32.mrf.mxu0
        %1548 = vmatprep.mubr.f32.mxu0 0.0
        %1549 = vmatmul.mubr.f32.gmra.mxu0 %v1353
        %v1550 = vpop.f32.mrf.mxu0
        %v1551 = vadd.f32 0.0, %v1550
        %v1552 = vpop.f32.mrf.mxu0
        %1553 = vmatprep.mubr.f32.mxu0 0.0
        %1554 = vmatmul.mubr.f32.gmra.mxu0 %v1356
        %v1555 = vpop.f32.mrf.mxu0
        %v1556 = vadd.f32 0.0, %v1555
        %v1557 = vpop.f32.mrf.mxu0
        %1558 = vmatprep.mubr.f32.mxu0 0.0
        %1559 = vmatmul.mubr.f32.gmra.mxu0 %v1359
        %v1560 = vpop.f32.mrf.mxu0
        %v1561 = vadd.f32 0.0, %v1560
        %v1562 = vpop.f32.mrf.mxu0
        %1563 = vmatprep.mubr.f32.mxu0 0.0
        %1564 = vmatmul.mubr.f32.gmra.mxu0 %v1362
        %v1565 = vpop.f32.mrf.mxu0
        %v1566 = vadd.f32 0.0, %v1565
        %v1567 = vpop.f32.mrf.mxu0
        %1568 = vmatprep.mubr.f32.mxu0 0.0
        %1569 = vmatmul.mubr.f32.gmra.mxu0 %v1365
        %v1570 = vpop.f32.mrf.mxu0
        %v1571 = vadd.f32 0.0, %v1570
        %v1572 = vpop.f32.mrf.mxu0
        %1573 = vmatprep.mubr.f32.mxu0 0.0
        %1574 = vmatmul.mubr.f32.gmra.mxu0 %v1368
        %v1575 = vpop.f32.mrf.mxu0
        %v1576 = vadd.f32 0.0, %v1575
        %v1577 = vpop.f32.mrf.mxu0
        %1578 = vmatprep.mubr.f32.mxu0 0.0
        %1579 = vmatmul.mubr.f32.gmra.mxu0 %v1371
        %v1580 = vpop.f32.mrf.mxu0
        %v1581 = vadd.f32 0.0, %v1580
        %v1582 = vpop.f32.mrf.mxu0
        %1583 = vmatprep.mubr.f32.mxu0 0.0
        %1584 = vmatmul.mubr.f32.gmra.mxu0 %v1374
        %v1585 = vpop.f32.mrf.mxu0
        %v1586 = vadd.f32 0.0, %v1585
        %v1587 = vpop.f32.mrf.mxu0
        %1588 = vmatprep.mubr.f32.mxu0 0.0
        %1589 = vmatmul.mubr.f32.gmra.mxu0 %v1377
        %v1590 = vpop.f32.mrf.mxu0
        %v1591 = vadd.f32 0.0, %v1590
        %v1592 = vpop.f32.mrf.mxu0
        %1593 = vmatprep.mubr.f32.mxu0 0.0
        %1594 = vmatmul.mubr.f32.gmra.mxu0 %v1380
        %v1595 = vpop.f32.mrf.mxu0
        %v1596 = vadd.f32 0.0, %v1595
        %v1597 = vpop.f32.mrf.mxu0
        %1598 = vmatprep.mubr.f32.mxu0 0.0
        %1599 = vmatmul.mubr.f32.gmra.mxu0 %v1383
        %v1600 = vpop.f32.mrf.mxu0
        %v1601 = vadd.f32 0.0, %v1600
        %v1602 = vpop.f32.mrf.mxu0
        %1603 = vmatprep.mubr.f32.mxu0 0.0
        %1604 = vmatmul.mubr.f32.gmra.mxu0 %v1386
        %v1605 = vpop.f32.mrf.mxu0
        %v1606 = vadd.f32 0.0, %v1605
        %v1607 = vpop.f32.mrf.mxu0
        %1608 = vmatprep.mubr.f32.mxu0 0.0
        %1609 = vmatmul.mubr.f32.gmra.mxu0 %v1389
        %v1610 = vpop.f32.mrf.mxu0
        %v1611 = vadd.f32 0.0, %v1610
        %v1612 = vpop.f32.mrf.mxu0
        %1613 = vmatprep.mubr.f32.mxu0 0.0
        %1614 = vmatmul.mubr.f32.gmra.mxu0 %v1392
        %v1615 = vpop.f32.mrf.mxu0
        %v1616 = vadd.f32 0.0, %v1615
        %v1617 = vpop.f32.mrf.mxu0
        %1618 = vmatprep.mubr.f32.mxu0 0.0
        %1619 = vmatmul.mubr.f32.gmra.mxu0 %v1395
        %v1620 = vpop.f32.mrf.mxu0
        %v1621 = vadd.f32 0.0, %v1620
        %v1622 = vpop.f32.mrf.mxu0
        %1623 = vmatprep.mubr.f32.mxu0 0.0
        %1624 = vmatmul.mubr.f32.gmra.mxu0 %v1398
        %v1625 = vpop.f32.mrf.mxu0
        %v1626 = vadd.f32 0.0, %v1625
        %v1627 = vpop.f32.mrf.mxu0
        %1628 = vmatprep.mubr.f32.mxu0 0.0
        %1629 = vmatmul.mubr.f32.gmra.mxu0 %v1401
        %v1630 = vpop.f32.mrf.mxu0
        %v1631 = vadd.f32 0.0, %v1630
        %v1632 = vpop.f32.mrf.mxu0
        %1633 = vmatprep.mubr.f32.mxu0 0.0
        %1634 = vmatmul.mubr.f32.gmra.mxu0 %v1404
        %v1635 = vpop.f32.mrf.mxu0
        %v1636 = vadd.f32 0.0, %v1635
        %v1637 = vpop.f32.mrf.mxu0
        %1638 = vmatprep.mubr.f32.mxu0 0.0
        %1639 = vmatmul.mubr.f32.gmra.mxu0 %v1407
        %v1640 = vpop.f32.mrf.mxu0
        %v1641 = vadd.f32 0.0, %v1640
        %v1642 = vpop.f32.mrf.mxu0
        %1643 = vmatprep.mubr.f32.mxu0 0.0
        %1644 = vmatmul.mubr.f32.gmra.mxu0 %v1410
        %v1645 = vpop.f32.mrf.mxu0
        %v1646 = vadd.f32 0.0, %v1645
        %v1647 = vpop.f32.mrf.mxu0
        %1648 = vmatprep.mubr.f32.mxu0 0.0
        %1649 = vmatmul.mubr.f32.gmra.mxu0 %v1413
        %v1650 = vpop.f32.mrf.mxu0
        %v1651 = vadd.f32 0.0, %v1650
        %v1652 = vpop.f32.mrf.mxu0
        %1653 = vmatprep.mubr.f32.mxu0 0.0
        %1654 = vmatmul.mubr.f32.gmra.mxu0 %v1416
        %v1655 = vpop.f32.mrf.mxu0
        %v1656 = vadd.f32 0.0, %v1655
        %v1657 = vpop.f32.mrf.mxu0
        %1658 = vmatprep.mubr.f32.mxu0 0.0
        %1659 = vmatmul.mubr.f32.gmra.mxu0 %v1419
        %v1660 = vpop.f32.mrf.mxu0
        %v1661 = vadd.f32 0.0, %v1660
        %v1662 = vpop.f32.mrf.mxu0
        %1663 = vmatprep.mubr.f32.mxu0 0.0
        %1664 = vmatmul.mubr.f32.gmra.mxu0 %v1422
        %v1665 = vpop.f32.mrf.mxu0
        %v1666 = vadd.f32 0.0, %v1665
        %v1667 = vpop.f32.mrf.mxu0
        %1668 = vmatprep.mubr.f32.mxu0 0.0
        %1669 = vmatmul.mubr.f32.gmra.mxu0 %v1425
        %v1670 = vpop.f32.mrf.mxu0
        %v1671 = vadd.f32 0.0, %v1670
        %v1672 = vpop.f32.mrf.mxu0
        %1673 = vmatprep.mubr.f32.mxu0 0.0
        %1674 = vmatmul.mubr.f32.gmra.mxu0 %v1428
        %v1675 = vpop.f32.mrf.mxu0
        %v1676 = vadd.f32 0.0, %v1675
        %v1677 = vpop.f32.mrf.mxu0
        %1678 = vmatprep.mubr.f32.mxu0 0.0
        %1679 = vmatmul.mubr.f32.gmra.mxu0 %v1431
        %v1680 = vpop.f32.mrf.mxu0
        %v1681 = vadd.f32 0.0, %v1680
        %v1682 = vpop.f32.mrf.mxu0
        %1683 = vmatprep.mubr.f32.mxu0 0.0
        %1684 = vmatmul.mubr.f32.gmra.mxu0 %v1434
        %v1685 = vpop.f32.mrf.mxu0
        %v1686 = vadd.f32 0.0, %v1685
        %v1687 = vpop.f32.mrf.mxu0
        %1688 = vmatprep.mubr.f32.mxu0 0.0
        %1689 = vmatmul.mubr.f32.gmra.mxu0 %v1437
        %v1690 = vpop.f32.mrf.mxu0
        %v1691 = vadd.f32 0.0, %v1690
        %v1692 = vpop.f32.mrf.mxu0
        %1693 = vmatprep.mubr.f32.mxu0 0.0
        %1694 = vmatmul.mubr.f32.gmra.mxu0 %v1440
        %v1695 = vpop.f32.mrf.mxu0
        %v1696 = vadd.f32 0.0, %v1695
        %v1697 = vpop.f32.mrf.mxu0
        %1698 = vmatprep.mubr.f32.mxu0 0.0
        %1699 = vmatmul.mubr.f32.gmra.mxu0 %v1443
        %v1700 = vpop.f32.mrf.mxu0
        %v1701 = vadd.f32 0.0, %v1700
        %v1702 = vpop.f32.mrf.mxu0
        %1703 = vmatprep.mubr.f32.mxu0 0.0
        %1704 = vmatmul.mubr.f32.gmra.mxu0 %v1446
        %v1705 = vpop.f32.mrf.mxu0
        %v1706 = vadd.f32 0.0, %v1705
        %v1707 = vpop.f32.mrf.mxu0
        %1708 = vmatprep.mubr.f32.mxu0 0.0
        %1709 = vmatmul.mubr.f32.gmra.mxu0 %v1449
        %v1710 = vpop.f32.mrf.mxu0
        %v1711 = vadd.f32 0.0, %v1710
        %v1712 = vpop.f32.mrf.mxu0
        %1713 = vmatprep.mubr.f32.mxu0 0.0
        %1714 = vmatmul.mubr.f32.gmra.mxu0 %v1452
        %v1715 = vpop.f32.mrf.mxu0
        %v1716 = vadd.f32 0.0, %v1715
        %v1717 = vpop.f32.mrf.mxu0
        %1718 = vdwg.mxu0
        %v1720 = vcombine.high %v1329, %v1329
        %v1722 = vunpack.c.l.s4 1966171168
        %v1723 = vunpack.c.0.s8 %v1722
        %v1724 = vlaneseq
        %v1725 = vshrl.u32 %v1724, 7
        %v1726 = vsub.s32 %v1723, %v1725
        %v1727 = vrot.slane %v1329, %v1726
        %v1729 = vunpack.c.l.s4 1966171168
        %v1730 = vunpack.c.0.s8 %v1729
        %v1731 = vlaneseq
        %v1732 = vshrl.u32 %v1731, 7
        %v1733 = vsub.s32 %v1730, %v1732
        %v1734 = vrot.slane %v1720, %v1733
        %v1735 = vcombine.high %v1727, %v1727
        %v1736 = vcombine.high %v1734, %v1734
        %v1738 = vunpack.c.l.s4 1966171168
        %v1739 = vunpack.c.0.s8 %v1738
        %v1740 = vlaneseq
        %v1741 = vshrl.u32 %v1740, 7
        %v1742 = vsub.s32 %v1739, %v1741
        %v1743 = vrot.slane %v1727, %v1742
        %v1745 = vunpack.c.l.s4 1966171168
        %v1746 = vunpack.c.0.s8 %v1745
        %v1747 = vlaneseq
        %v1748 = vshrl.u32 %v1747, 7
        %v1749 = vsub.s32 %v1746, %v1748
        %v1750 = vrot.slane %v1734, %v1749
        %v1752 = vunpack.c.l.s4 1966171168
        %v1753 = vunpack.c.0.s8 %v1752
        %v1754 = vlaneseq
        %v1755 = vshrl.u32 %v1754, 7
        %v1756 = vsub.s32 %v1753, %v1755
        %v1757 = vrot.slane %v1735, %v1756
        %v1759 = vunpack.c.l.s4 1966171168
        %v1760 = vunpack.c.0.s8 %v1759
        %v1761 = vlaneseq
        %v1762 = vshrl.u32 %v1761, 7
        %v1763 = vsub.s32 %v1760, %v1762
        %v1764 = vrot.slane %v1736, %v1763
        %v1765 = vcombine.high %v1743, %v1743
        %v1766 = vcombine.high %v1750, %v1750
        %v1767 = vcombine.high %v1757, %v1757
        %v1768 = vcombine.high %v1764, %v1764
        %v1769 = vlaneseq
        %v1770 = vshrl.u32 %v1769, 7
        %v1771 = vsub.s32 0, %v1770
        %v1772 = vrot.slane %v1743, %v1771
        %v1773 = vlaneseq
        %v1774 = vshrl.u32 %v1773, 7
        %v1775 = vsub.s32 0, %v1774
        %v1776 = vrot.slane %v1757, %v1775
        %v1777 = vlaneseq
        %v1778 = vshrl.u32 %v1777, 7
        %v1779 = vsub.s32 0, %v1778
        %v1780 = vrot.slane %v1765, %v1779
        %v1781 = vlaneseq
        %v1782 = vshrl.u32 %v1781, 7
        %v1783 = vsub.s32 0, %v1782
        %v1784 = vrot.slane %v1767, %v1783
        %v1785 = vlaneseq
        %v1786 = vshrl.u32 %v1785, 7
        %v1787 = vsub.s32 0, %v1786
        %v1788 = vrot.slane %v1750, %v1787
        %v1789 = vlaneseq
        %v1790 = vshrl.u32 %v1789, 7
        %v1791 = vsub.s32 0, %v1790
        %v1792 = vrot.slane %v1764, %v1791
        %v1793 = vlaneseq
        %v1794 = vshrl.u32 %v1793, 7
        %v1795 = vsub.s32 0, %v1794
        %v1796 = vrot.slane %v1766, %v1795
        %v1797 = vlaneseq
        %v1798 = vshrl.u32 %v1797, 7
        %v1799 = vsub.s32 0, %v1798
        %v1800 = vrot.slane %v1768, %v1799
        %v1809 = vadd.f32 %v1521, %v1772
        %v1810 = vadd.f32 %v1526, %v1772
        %v1811 = vadd.f32 %v1531, %v1772
        %v1812 = vadd.f32 %v1536, %v1772
        %v1813 = vadd.f32 %v1541, %v1772
        %v1814 = vadd.f32 %v1546, %v1776
        %v1815 = vadd.f32 %v1551, %v1776
        %v1816 = vadd.f32 %v1556, %v1776
        %v1817 = vadd.f32 %v1561, %v1776
        %v1818 = vadd.f32 %v1566, %v1776
        %v1819 = vadd.f32 %v1571, %v1780
        %v1820 = vadd.f32 %v1576, %v1780
        %v1821 = vadd.f32 %v1581, %v1780
        %v1822 = vadd.f32 %v1586, %v1780
        %v1823 = vadd.f32 %v1591, %v1780
        %v1824 = vadd.f32 %v1596, %v1784
        %v1825 = vadd.f32 %v1601, %v1784
        %v1826 = vadd.f32 %v1606, %v1784
        %v1827 = vadd.f32 %v1611, %v1784
        %v1828 = vadd.f32 %v1616, %v1784
        %v1829 = vadd.f32 %v1621, %v1788
        %v1830 = vadd.f32 %v1626, %v1788
        %v1831 = vadd.f32 %v1631, %v1788
        %v1832 = vadd.f32 %v1636, %v1788
        %v1833 = vadd.f32 %v1641, %v1788
        %v1834 = vadd.f32 %v1646, %v1792
        %v1835 = vadd.f32 %v1651, %v1792
        %v1836 = vadd.f32 %v1656, %v1792
        %v1837 = vadd.f32 %v1661, %v1792
        %v1838 = vadd.f32 %v1666, %v1792
        %v1839 = vadd.f32 %v1671, %v1796
        %v1840 = vadd.f32 %v1676, %v1796
        %v1841 = vadd.f32 %v1681, %v1796
        %v1842 = vadd.f32 %v1686, %v1796
        %v1843 = vadd.f32 %v1691, %v1796
        %v1844 = vadd.f32 %v1696, %v1800
        %v1845 = vadd.f32 %v1701, %v1800
        %v1846 = vadd.f32 %v1706, %v1800
        %v1847 = vadd.f32 %v1711, %v1800
        %v1848 = vadd.f32 %v1716, %v1800
        %v1849 = vmul.f32 %v577, %v1809
        %v1850 = vmul.f32 %v578, %v1810
        %v1851 = vmul.f32 %v579, %v1811
        %v1852 = vmul.f32 %v580, %v1812
        %v1853 = vmul.f32 %v581, %v1813
        %v1854 = vmul.f32 %v582, %v1814
        %v1855 = vmul.f32 %v583, %v1815
        %v1856 = vmul.f32 %v584, %v1816
        %v1857 = vmul.f32 %v585, %v1817
        %v1858 = vmul.f32 %v586, %v1818
        %v1859 = vmul.f32 %v587, %v1819
        %v1860 = vmul.f32 %v588, %v1820
        %v1861 = vmul.f32 %v589, %v1821
        %v1862 = vmul.f32 %v590, %v1822
        %v1863 = vmul.f32 %v591, %v1823
        %v1864 = vmul.f32 %v592, %v1824
        %v1865 = vmul.f32 %v593, %v1825
        %v1866 = vmul.f32 %v594, %v1826
        %v1867 = vmul.f32 %v595, %v1827
        %v1868 = vmul.f32 %v596, %v1828
        %v1869 = vmul.f32 %v597, %v1829
        %v1870 = vmul.f32 %v598, %v1830
        %v1871 = vmul.f32 %v599, %v1831
        %v1872 = vmul.f32 %v600, %v1832
        %v1873 = vmul.f32 %v601, %v1833
        %v1874 = vmul.f32 %v602, %v1834
        %v1875 = vmul.f32 %v603, %v1835
        %v1876 = vmul.f32 %v604, %v1836
        %v1877 = vmul.f32 %v605, %v1837
        %v1878 = vmul.f32 %v606, %v1838
        %v1879 = vmul.f32 %v607, %v1839
        %v1880 = vmul.f32 %v608, %v1840
        %v1881 = vmul.f32 %v609, %v1841
        %v1882 = vmul.f32 %v610, %v1842
        %v1883 = vmul.f32 %v611, %v1843
        %v1884 = vmul.f32 %v612, %v1844
        %v1885 = vmul.f32 %v613, %v1845
        %v1886 = vmul.f32 %v614, %v1846
        %v1887 = vmul.f32 %v615, %v1847
        %v1888 = vmul.f32 %v616, %v1848
        %v1889 = vld [vmem:[%s5] sm:$0x1]
        %v1891 = vlaneseq
        %v1892 = vshrl.u32 %v1891, 7
        %v1893 = vsub.s32 0, %v1892
        %v1894 = vrot.slane %v1889, %v1893
        %v1896 = vadd.f32 %v1849, %v1894
        %v1897 = vadd.f32 %v1850, %v1894
        %v1898 = vadd.f32 %v1851, %v1894
        %v1899 = vadd.f32 %v1852, %v1894
        %v1900 = vadd.f32 %v1853, %v1894
        %v1901 = vadd.f32 %v1854, %v1894
        %v1902 = vadd.f32 %v1855, %v1894
        %v1903 = vadd.f32 %v1856, %v1894
        %v1904 = vadd.f32 %v1857, %v1894
        %v1905 = vadd.f32 %v1858, %v1894
        %v1906 = vadd.f32 %v1859, %v1894
        %v1907 = vadd.f32 %v1860, %v1894
        %v1908 = vadd.f32 %v1861, %v1894
        %v1909 = vadd.f32 %v1862, %v1894
        %v1910 = vadd.f32 %v1863, %v1894
        %v1911 = vadd.f32 %v1864, %v1894
        %v1912 = vadd.f32 %v1865, %v1894
        %v1913 = vadd.f32 %v1866, %v1894
        %v1914 = vadd.f32 %v1867, %v1894
        %v1915 = vadd.f32 %v1868, %v1894
        %v1916 = vadd.f32 %v1869, %v1894
        %v1917 = vadd.f32 %v1870, %v1894
        %v1918 = vadd.f32 %v1871, %v1894
        %v1919 = vadd.f32 %v1872, %v1894
        %v1920 = vadd.f32 %v1873, %v1894
        %v1921 = vadd.f32 %v1874, %v1894
        %v1922 = vadd.f32 %v1875, %v1894
        %v1923 = vadd.f32 %v1876, %v1894
        %v1924 = vadd.f32 %v1877, %v1894
        %v1925 = vadd.f32 %v1878, %v1894
        %v1926 = vadd.f32 %v1879, %v1894
        %v1927 = vadd.f32 %v1880, %v1894
        %v1928 = vadd.f32 %v1881, %v1894
        %v1929 = vadd.f32 %v1882, %v1894
        %v1930 = vadd.f32 %v1883, %v1894
        %v1931 = vadd.f32 %v1884, %v1894
        %v1932 = vadd.f32 %v1885, %v1894
        %v1933 = vadd.f32 %v1886, %v1894
        %v1934 = vadd.f32 %v1887, %v1894
        %v1935 = vadd.f32 %v1888, %v1894
        %v1936 = vmax.f32 %v1896, 0.0
        %v1937 = vmax.f32 %v1897, 0.0
        %v1938 = vmax.f32 %v1898, 0.0
        %v1939 = vmax.f32 %v1899, 0.0
        %v1940 = vmax.f32 %v1900, 0.0
        %v1941 = vmax.f32 %v1901, 0.0
        %v1942 = vmax.f32 %v1902, 0.0
        %v1943 = vmax.f32 %v1903, 0.0
        %v1944 = vmax.f32 %v1904, 0.0
        %v1945 = vmax.f32 %v1905, 0.0
        %v1946 = vmax.f32 %v1906, 0.0
        %v1947 = vmax.f32 %v1907, 0.0
        %v1948 = vmax.f32 %v1908, 0.0
        %v1949 = vmax.f32 %v1909, 0.0
        %v1950 = vmax.f32 %v1910, 0.0
        %v1951 = vmax.f32 %v1911, 0.0
        %v1952 = vmax.f32 %v1912, 0.0
        %v1953 = vmax.f32 %v1913, 0.0
        %v1954 = vmax.f32 %v1914, 0.0
        %v1955 = vmax.f32 %v1915, 0.0
        %v1956 = vmax.f32 %v1916, 0.0
        %v1957 = vmax.f32 %v1917, 0.0
        %v1958 = vmax.f32 %v1918, 0.0
        %v1959 = vmax.f32 %v1919, 0.0
        %v1960 = vmax.f32 %v1920, 0.0
        %v1961 = vmax.f32 %v1921, 0.0
        %v1962 = vmax.f32 %v1922, 0.0
        %v1963 = vmax.f32 %v1923, 0.0
        %v1964 = vmax.f32 %v1924, 0.0
        %v1965 = vmax.f32 %v1925, 0.0
        %v1966 = vmax.f32 %v1926, 0.0
        %v1967 = vmax.f32 %v1927, 0.0
        %v1968 = vmax.f32 %v1928, 0.0
        %v1969 = vmax.f32 %v1929, 0.0
        %v1970 = vmax.f32 %v1930, 0.0
        %v1971 = vmax.f32 %v1931, 0.0
        %v1972 = vmax.f32 %v1932, 0.0
        %v1973 = vmax.f32 %v1933, 0.0
        %v1974 = vmax.f32 %v1934, 0.0
        %v1975 = vmax.f32 %v1935, 0.0
        %v1976 = vsel %vm1070, %v1936, 0.0
        %v1977 = vsel %vm1071, %v1937, 0.0
        %v1978 = vsel %vm1072, %v1938, 0.0
        %v1979 = vsel %vm1073, %v1939, 0.0
        %v1980 = vsel %vm1074, %v1940, 0.0
        %v1981 = vsel %vm1070, %v1941, 0.0
        %v1982 = vsel %vm1071, %v1942, 0.0
        %v1983 = vsel %vm1072, %v1943, 0.0
        %v1984 = vsel %vm1073, %v1944, 0.0
        %v1985 = vsel %vm1074, %v1945, 0.0
        %v1986 = vsel %vm1070, %v1946, 0.0
        %v1987 = vsel %vm1071, %v1947, 0.0
        %v1988 = vsel %vm1072, %v1948, 0.0
        %v1989 = vsel %vm1073, %v1949, 0.0
        %v1990 = vsel %vm1074, %v1950, 0.0
        %v1991 = vsel %vm1070, %v1951, 0.0
        %v1992 = vsel %vm1071, %v1952, 0.0
        %v1993 = vsel %vm1072, %v1953, 0.0
        %v1994 = vsel %vm1073, %v1954, 0.0
        %v1995 = vsel %vm1074, %v1955, 0.0
        %v1996 = vsel %vm1070, %v1956, 0.0
        %v1997 = vsel %vm1071, %v1957, 0.0
        %v1998 = vsel %vm1072, %v1958, 0.0
        %v1999 = vsel %vm1073, %v1959, 0.0
        %v2000 = vsel %vm1074, %v1960, 0.0
        %v2001 = vsel %vm1070, %v1961, 0.0
        %v2002 = vsel %vm1071, %v1962, 0.0
        %v2003 = vsel %vm1072, %v1963, 0.0
        %v2004 = vsel %vm1073, %v1964, 0.0
        %v2005 = vsel %vm1074, %v1965, 0.0
        %v2006 = vsel %vm1070, %v1966, 0.0
        %v2007 = vsel %vm1071, %v1967, 0.0
        %v2008 = vsel %vm1072, %v1968, 0.0
        %v2009 = vsel %vm1073, %v1969, 0.0
        %v2010 = vsel %vm1074, %v1970, 0.0
        %v2011 = vsel %vm1070, %v1971, 0.0
        %v2012 = vsel %vm1071, %v1972, 0.0
        %v2013 = vsel %vm1072, %v1973, 0.0
        %v2014 = vsel %vm1073, %v1974, 0.0
        %v2015 = vsel %vm1074, %v1975, 0.0
        %vm2016 = vcmask 523264
        %v2017 = vsel %vm2016, %v1976, -inf
        %v2018 = vsel %vm2016, %v1977, -inf
        %v2019 = vmax.f32 %v2017, %v2018
        %v2020 = vsel %vm2016, %v1978, -inf
        %v2021 = vmax.f32 %v2019, %v2020
        %v2022 = vsel %vm2016, %v1979, -inf
        %v2023 = vmax.f32 %v2021, %v2022
        %v2024 = vsel %vm2016, %v1980, -inf
        %v2025 = vmax.f32 %v2023, %v2024
        %v2026 = vrot.slane %v2025, 4
        %v2027 = vmax.f32 %v2025, %v2026
        %v2028 = vrot.slane %v2027, 2
        %v2029 = vmax.f32 %v2027, %v2028
        %v2030 = vrot.slane %v2029, 1
        %v2031 = vmax.f32 %v2029, %v2030
        %v2032 = vsel %vm2016, %v1981, -inf
        %v2033 = vsel %vm2016, %v1982, -inf
        %v2034 = vmax.f32 %v2032, %v2033
        %v2035 = vsel %vm2016, %v1983, -inf
        %v2036 = vmax.f32 %v2034, %v2035
        %v2037 = vsel %vm2016, %v1984, -inf
        %v2038 = vmax.f32 %v2036, %v2037
        %v2039 = vsel %vm2016, %v1985, -inf
        %v2040 = vmax.f32 %v2038, %v2039
        %v2041 = vrot.slane %v2040, 4
        %v2042 = vmax.f32 %v2040, %v2041
        %v2043 = vrot.slane %v2042, 2
        %v2044 = vmax.f32 %v2042, %v2043
        %v2045 = vrot.slane %v2044, 1
        %v2046 = vmax.f32 %v2044, %v2045
        %v2047 = vsel %vm2016, %v1986, -inf
        %v2048 = vsel %vm2016, %v1987, -inf
        %v2049 = vmax.f32 %v2047, %v2048
        %v2050 = vsel %vm2016, %v1988, -inf
        %v2051 = vmax.f32 %v2049, %v2050
        %v2052 = vsel %vm2016, %v1989, -inf
        %v2053 = vmax.f32 %v2051, %v2052
        %v2054 = vsel %vm2016, %v1990, -inf
        %v2055 = vmax.f32 %v2053, %v2054
        %v2056 = vrot.slane %v2055, 4
        %v2057 = vmax.f32 %v2055, %v2056
        %v2058 = vrot.slane %v2057, 2
        %v2059 = vmax.f32 %v2057, %v2058
        %v2060 = vrot.slane %v2059, 1
        %v2061 = vmax.f32 %v2059, %v2060
        %v2062 = vsel %vm2016, %v1991, -inf
        %v2063 = vsel %vm2016, %v1992, -inf
        %v2064 = vmax.f32 %v2062, %v2063
        %v2065 = vsel %vm2016, %v1993, -inf
        %v2066 = vmax.f32 %v2064, %v2065
        %v2067 = vsel %vm2016, %v1994, -inf
        %v2068 = vmax.f32 %v2066, %v2067
        %v2069 = vsel %vm2016, %v1995, -inf
        %v2070 = vmax.f32 %v2068, %v2069
        %v2071 = vrot.slane %v2070, 4
        %v2072 = vmax.f32 %v2070, %v2071
        %v2073 = vrot.slane %v2072, 2
        %v2074 = vmax.f32 %v2072, %v2073
        %v2075 = vrot.slane %v2074, 1
        %v2076 = vmax.f32 %v2074, %v2075
        %v2077 = vsel %vm2016, %v1996, -inf
        %v2078 = vsel %vm2016, %v1997, -inf
        %v2079 = vmax.f32 %v2077, %v2078
        %v2080 = vsel %vm2016, %v1998, -inf
        %v2081 = vmax.f32 %v2079, %v2080
        %v2082 = vsel %vm2016, %v1999, -inf
        %v2083 = vmax.f32 %v2081, %v2082
        %v2084 = vsel %vm2016, %v2000, -inf
        %v2085 = vmax.f32 %v2083, %v2084
        %v2086 = vrot.slane %v2085, 4
        %v2087 = vmax.f32 %v2085, %v2086
        %v2088 = vrot.slane %v2087, 2
        %v2089 = vmax.f32 %v2087, %v2088
        %v2090 = vrot.slane %v2089, 1
        %v2091 = vmax.f32 %v2089, %v2090
        %v2092 = vsel %vm2016, %v2001, -inf
        %v2093 = vsel %vm2016, %v2002, -inf
        %v2094 = vmax.f32 %v2092, %v2093
        %v2095 = vsel %vm2016, %v2003, -inf
        %v2096 = vmax.f32 %v2094, %v2095
        %v2097 = vsel %vm2016, %v2004, -inf
        %v2098 = vmax.f32 %v2096, %v2097
        %v2099 = vsel %vm2016, %v2005, -inf
        %v2100 = vmax.f32 %v2098, %v2099
        %v2101 = vrot.slane %v2100, 4
        %v2102 = vmax.f32 %v2100, %v2101
        %v2103 = vrot.slane %v2102, 2
        %v2104 = vmax.f32 %v2102, %v2103
        %v2105 = vrot.slane %v2104, 1
        %v2106 = vmax.f32 %v2104, %v2105
        %v2107 = vsel %vm2016, %v2006, -inf
        %v2108 = vsel %vm2016, %v2007, -inf
        %v2109 = vmax.f32 %v2107, %v2108
        %v2110 = vsel %vm2016, %v2008, -inf
        %v2111 = vmax.f32 %v2109, %v2110
        %v2112 = vsel %vm2016, %v2009, -inf
        %v2113 = vmax.f32 %v2111, %v2112
        %v2114 = vsel %vm2016, %v2010, -inf
        %v2115 = vmax.f32 %v2113, %v2114
        %v2116 = vrot.slane %v2115, 4
        %v2117 = vmax.f32 %v2115, %v2116
        %v2118 = vrot.slane %v2117, 2
        %v2119 = vmax.f32 %v2117, %v2118
        %v2120 = vrot.slane %v2119, 1
        %v2121 = vmax.f32 %v2119, %v2120
        %v2122 = vsel %vm2016, %v2011, -inf
        %v2123 = vsel %vm2016, %v2012, -inf
        %v2124 = vmax.f32 %v2122, %v2123
        %v2125 = vsel %vm2016, %v2013, -inf
        %v2126 = vmax.f32 %v2124, %v2125
        %v2127 = vsel %vm2016, %v2014, -inf
        %v2128 = vmax.f32 %v2126, %v2127
        %v2129 = vsel %vm2016, %v2015, -inf
        %v2130 = vmax.f32 %v2128, %v2129
        %v2131 = vrot.slane %v2130, 4
        %v2132 = vmax.f32 %v2130, %v2131
        %v2133 = vrot.slane %v2132, 2
        %v2134 = vmax.f32 %v2132, %v2133
        %v2135 = vrot.slane %v2134, 1
        %v2136 = vmax.f32 %v2134, %v2135
        %v2137 = vld [vmem:[%s7] sm:$0xff]
        %v2138 = vld [vmem:[%s7 + $0x8] sm:$0xff]
        %v2139 = vld [vmem:[%s7 + $0x10] sm:$0xff]
        %v2140 = vld [vmem:[%s7 + $0x18] sm:$0xff]
        %v2141 = vld [vmem:[%s7 + $0x20] sm:$0xff]
        %v2142 = vld [vmem:[%s7 + $0x28] sm:$0xff]
        %v2143 = vld [vmem:[%s7 + $0x30] sm:$0xff]
        %v2144 = vld [vmem:[%s7 + $0x38] sm:$0xff]
        %v2153 = vsel %vm1246, %v2046, %v2031
        %v2154 = vsel %vm1248, %v2061, %v2153
        %v2155 = vsel %vm1250, %v2076, %v2154
        %v2156 = vsel %vm1252, %v2091, %v2155
        %v2157 = vsel %vm1254, %v2106, %v2156
        %v2158 = vsel %vm1256, %v2121, %v2157
        %v2159 = vsel %vm1258, %v2136, %v2158
        %v2160 = vsel %vm2016, %v2159, 0
        %2162 = vmatprep.subr.mxu0 0.0
        %2163 = vmatpush1.msra.mxu0 0.0
        %2164 = vmatprep.subr.mxu0 0.0
        %2165 = vmatpush1.msra.mxu0 0.0
        %2166 = vmatprep.subr.mxu0 0.0
        %2167 = vmatpush1.msra.mxu0 0.0
        %2168 = vmatprep.subr.mxu0 0.0
        %2169 = vmatpush1.msra.mxu0 0.0
        %2170 = vmatprep.subr.mxu0 0.0
        %2171 = vmatpush1.msra.mxu0 0.0
        %2172 = vmatprep.subr.mxu0 0.0
        %2173 = vmatpush1.msra.mxu0 0.0
        %2174 = vmatprep.subr.mxu0 0.0
        %2175 = vmatpush1.msra.mxu0 0.0
        %2176 = vmatprep.subr.mxu0 0.0
        %2177 = vmatpush1.msra.mxu0 0.0
        %2178 = vmatprep.subr.mxu0 0.0
        %2179 = vmatpush1.msra.mxu0 %v2144
        %2180 = vmatprep.subr.mxu0 0.0
        %2181 = vmatpush1.msra.mxu0 %v2143
        %2182 = vmatprep.subr.mxu0 0.0
        %2183 = vmatpush1.msra.mxu0 %v2142
        %2184 = vmatprep.subr.mxu0 0.0
        %2185 = vmatpush1.msra.mxu0 %v2141
        %2186 = vmatprep.subr.mxu0 0.0
        %2187 = vmatpush1.msra.mxu0 %v2140
        %2188 = vmatprep.subr.mxu0 0.0
        %2189 = vmatpush1.msra.mxu0 %v2139
        %2190 = vmatprep.subr.mxu0 0.0
        %2191 = vmatpush1.msra.mxu0 %v2138
        %2192 = vmatprep.subr.mxu0 0.0
        %2193 = vmatpush1.msra.mxu0 %v2137
        %2194 = vmatprep.subr.mxu0 0.0
        %2195 = vmatpush2.msra.mxu0 0.0
        %2196 = vmatprep.subr.mxu0 0.0
        %2197 = vmatpush2.msra.mxu0 0.0
        %2198 = vmatprep.subr.mxu0 0.0
        %2199 = vmatpush2.msra.mxu0 0.0
        %2200 = vmatprep.subr.mxu0 0.0
        %2201 = vmatpush2.msra.mxu0 0.0
        %2202 = vmatprep.subr.mxu0 0.0
        %2203 = vmatpush2.msra.mxu0 0.0
        %2204 = vmatprep.subr.mxu0 0.0
        %2205 = vmatpush2.msra.mxu0 0.0
        %2206 = vmatprep.subr.mxu0 0.0
        %2207 = vmatpush2.msra.mxu0 0.0
        %2208 = vmatprep.subr.mxu0 0.0
        %2209 = vmatpush2.msra.mxu0 0.0
        %2210 = vmatprep.subr.mxu0 0.0
        %2211 = vmatpush2.msra.mxu0 0.0
        %2212 = vmatprep.subr.mxu0 0.0
        %2213 = vmatpush2.msra.mxu0 0.0
        %2214 = vmatprep.subr.mxu0 0.0
        %2215 = vmatpush2.msra.mxu0 0.0
        %2216 = vmatprep.subr.mxu0 0.0
        %2217 = vmatpush2.msra.mxu0 0.0
        %2218 = vmatprep.subr.mxu0 0.0
        %2219 = vmatpush2.msra.mxu0 0.0
        %2220 = vmatprep.subr.mxu0 0.0
        %2221 = vmatpush2.msra.mxu0 0.0
        %2222 = vmatprep.subr.mxu0 0.0
        %2223 = vmatpush2.msra.mxu0 0.0
        %2224 = vmatprep.subr.mxu0 0.0
        %2225 = vmatpush2.msra.mxu0 0.0
        %2226 = vmatprep.mubr.f32.mxu0 0.0
        %2227 = vmatmul.mubr.f32.gmra.mxu0 %v2160
        %v2228 = vpop.f32.mrf.mxu0
        %v2229 = vadd.f32 0.0, %v2228
        %v2230 = vpop.f32.mrf.mxu0
        %2231 = vdwg.mxu0
        %v2232 = vld [vmem:[%s6] sm:$0xff]
        %v2233 = vld [vmem:[%s6 + $0x8] sm:$0xff]
        %v2234 = vld [vmem:[%s6 + $0x10] sm:$0xff]
        %v2235 = vld [vmem:[%s6 + $0x18] sm:$0xff]
        %v2236 = vld [vmem:[%s6 + $0x20] sm:$0xff]
        %v2237 = vld [vmem:[%s6 + $0x28] sm:$0xff]
        %v2238 = vld [vmem:[%s6 + $0x30] sm:$0xff]
        %v2239 = vld [vmem:[%s6 + $0x38] sm:$0xff]
        %v2241 = vsel %vm2016, %v1936, 0
        %v2244 = vsel %vm2016, %v1937, 0
        %v2247 = vsel %vm2016, %v1938, 0
        %v2250 = vsel %vm2016, %v1939, 0
        %v2253 = vsel %vm2016, %v1940, 0
        %v2256 = vsel %vm2016, %v1941, 0
        %v2259 = vsel %vm2016, %v1942, 0
        %v2262 = vsel %vm2016, %v1943, 0
        %v2265 = vsel %vm2016, %v1944, 0
        %v2268 = vsel %vm2016, %v1945, 0
        %v2271 = vsel %vm2016, %v1946, 0
        %v2274 = vsel %vm2016, %v1947, 0
        %v2277 = vsel %vm2016, %v1948, 0
        %v2280 = vsel %vm2016, %v1949, 0
        %v2283 = vsel %vm2016, %v1950, 0
        %v2286 = vsel %vm2016, %v1951, 0
        %v2289 = vsel %vm2016, %v1952, 0
        %v2292 = vsel %vm2016, %v1953, 0
        %v2295 = vsel %vm2016, %v1954, 0
        %v2298 = vsel %vm2016, %v1955, 0
        %v2301 = vsel %vm2016, %v1956, 0
        %v2304 = vsel %vm2016, %v1957, 0
        %v2307 = vsel %vm2016, %v1958, 0
        %v2310 = vsel %vm2016, %v1959, 0
        %v2313 = vsel %vm2016, %v1960, 0
        %v2316 = vsel %vm2016, %v1961, 0
        %v2319 = vsel %vm2016, %v1962, 0
        %v2322 = vsel %vm2016, %v1963, 0
        %v2325 = vsel %vm2016, %v1964, 0
        %v2328 = vsel %vm2016, %v1965, 0
        %v2331 = vsel %vm2016, %v1966, 0
        %v2334 = vsel %vm2016, %v1967, 0
        %v2337 = vsel %vm2016, %v1968, 0
        %v2340 = vsel %vm2016, %v1969, 0
        %v2343 = vsel %vm2016, %v1970, 0
        %v2346 = vsel %vm2016, %v1971, 0
        %v2349 = vsel %vm2016, %v1972, 0
        %v2352 = vsel %vm2016, %v1973, 0
        %v2355 = vsel %vm2016, %v1974, 0
        %v2358 = vsel %vm2016, %v1975, 0
        %2360 = vmatprep.subr.mxu0 0.0
        %2361 = vmatpush1.msra.mxu0 0.0
        %2362 = vmatprep.subr.mxu0 0.0
        %2363 = vmatpush1.msra.mxu0 0.0
        %2364 = vmatprep.subr.mxu0 0.0
        %2365 = vmatpush1.msra.mxu0 0.0
        %2366 = vmatprep.subr.mxu0 0.0
        %2367 = vmatpush1.msra.mxu0 0.0
        %2368 = vmatprep.subr.mxu0 0.0
        %2369 = vmatpush1.msra.mxu0 0.0
        %2370 = vmatprep.subr.mxu0 0.0
        %2371 = vmatpush1.msra.mxu0 0.0
        %2372 = vmatprep.subr.mxu0 0.0
        %2373 = vmatpush1.msra.mxu0 0.0
        %2374 = vmatprep.subr.mxu0 0.0
        %2375 = vmatpush1.msra.mxu0 0.0
        %2376 = vmatprep.subr.mxu0 0.0
        %2377 = vmatpush1.msra.mxu0 %v2239
        %2378 = vmatprep.subr.mxu0 0.0
        %2379 = vmatpush1.msra.mxu0 %v2238
        %2380 = vmatprep.subr.mxu0 0.0
        %2381 = vmatpush1.msra.mxu0 %v2237
        %2382 = vmatprep.subr.mxu0 0.0
        %2383 = vmatpush1.msra.mxu0 %v2236
        %2384 = vmatprep.subr.mxu0 0.0
        %2385 = vmatpush1.msra.mxu0 %v2235
        %2386 = vmatprep.subr.mxu0 0.0
        %2387 = vmatpush1.msra.mxu0 %v2234
        %2388 = vmatprep.subr.mxu0 0.0
        %2389 = vmatpush1.msra.mxu0 %v2233
        %2390 = vmatprep.subr.mxu0 0.0
        %2391 = vmatpush1.msra.mxu0 %v2232
        %2392 = vmatprep.subr.mxu0 0.0
        %2393 = vmatpush2.msra.mxu0 0.0
        %2394 = vmatprep.subr.mxu0 0.0
        %2395 = vmatpush2.msra.mxu0 0.0
        %2396 = vmatprep.subr.mxu0 0.0
        %2397 = vmatpush2.msra.mxu0 0.0
        %2398 = vmatprep.subr.mxu0 0.0
        %2399 = vmatpush2.msra.mxu0 0.0
        %2400 = vmatprep.subr.mxu0 0.0
        %2401 = vmatpush2.msra.mxu0 0.0
        %2402 = vmatprep.subr.mxu0 0.0
        %2403 = vmatpush2.msra.mxu0 0.0
        %2404 = vmatprep.subr.mxu0 0.0
        %2405 = vmatpush2.msra.mxu0 0.0
        %2406 = vmatprep.subr.mxu0 0.0
        %2407 = vmatpush2.msra.mxu0 0.0
        %2408 = vmatprep.subr.mxu0 0.0
        %2409 = vmatpush2.msra.mxu0 0.0
        %2410 = vmatprep.subr.mxu0 0.0
        %2411 = vmatpush2.msra.mxu0 0.0
        %2412 = vmatprep.subr.mxu0 0.0
        %2413 = vmatpush2.msra.mxu0 0.0
        %2414 = vmatprep.subr.mxu0 0.0
        %2415 = vmatpush2.msra.mxu0 0.0
        %2416 = vmatprep.subr.mxu0 0.0
        %2417 = vmatpush2.msra.mxu0 0.0
        %2418 = vmatprep.subr.mxu0 0.0
        %2419 = vmatpush2.msra.mxu0 0.0
        %2420 = vmatprep.subr.mxu0 0.0
        %2421 = vmatpush2.msra.mxu0 0.0
        %2422 = vmatprep.subr.mxu0 0.0
        %2423 = vmatpush2.msra.mxu0 0.0
        %2424 = vmatprep.mubr.f32.mxu0 0.0
        %2425 = vmatmul.mubr.f32.gmra.mxu0 %v2241
        %v2426 = vpop.f32.mrf.mxu0
        %v2427 = vadd.f32 0.0, %v2426
        %v2428 = vpop.f32.mrf.mxu0
        %2429 = vmatprep.mubr.f32.mxu0 0.0
        %2430 = vmatmul.mubr.f32.gmra.mxu0 %v2244
        %v2431 = vpop.f32.mrf.mxu0
        %v2432 = vadd.f32 0.0, %v2431
        %v2433 = vpop.f32.mrf.mxu0
        %2434 = vmatprep.mubr.f32.mxu0 0.0
        %2435 = vmatmul.mubr.f32.gmra.mxu0 %v2247
        %v2436 = vpop.f32.mrf.mxu0
        %v2437 = vadd.f32 0.0, %v2436
        %v2438 = vpop.f32.mrf.mxu0
        %2439 = vmatprep.mubr.f32.mxu0 0.0
        %2440 = vmatmul.mubr.f32.gmra.mxu0 %v2250
        %v2441 = vpop.f32.mrf.mxu0
        %v2442 = vadd.f32 0.0, %v2441
        %v2443 = vpop.f32.mrf.mxu0
        %2444 = vmatprep.mubr.f32.mxu0 0.0
        %2445 = vmatmul.mubr.f32.gmra.mxu0 %v2253
        %v2446 = vpop.f32.mrf.mxu0
        %v2447 = vadd.f32 0.0, %v2446
        %v2448 = vpop.f32.mrf.mxu0
        %2449 = vmatprep.mubr.f32.mxu0 0.0
        %2450 = vmatmul.mubr.f32.gmra.mxu0 %v2256
        %v2451 = vpop.f32.mrf.mxu0
        %v2452 = vadd.f32 0.0, %v2451
        %v2453 = vpop.f32.mrf.mxu0
        %2454 = vmatprep.mubr.f32.mxu0 0.0
        %2455 = vmatmul.mubr.f32.gmra.mxu0 %v2259
        %v2456 = vpop.f32.mrf.mxu0
        %v2457 = vadd.f32 0.0, %v2456
        %v2458 = vpop.f32.mrf.mxu0
        %2459 = vmatprep.mubr.f32.mxu0 0.0
        %2460 = vmatmul.mubr.f32.gmra.mxu0 %v2262
        %v2461 = vpop.f32.mrf.mxu0
        %v2462 = vadd.f32 0.0, %v2461
        %v2463 = vpop.f32.mrf.mxu0
        %2464 = vmatprep.mubr.f32.mxu0 0.0
        %2465 = vmatmul.mubr.f32.gmra.mxu0 %v2265
        %v2466 = vpop.f32.mrf.mxu0
        %v2467 = vadd.f32 0.0, %v2466
        %v2468 = vpop.f32.mrf.mxu0
        %2469 = vmatprep.mubr.f32.mxu0 0.0
        %2470 = vmatmul.mubr.f32.gmra.mxu0 %v2268
        %v2471 = vpop.f32.mrf.mxu0
        %v2472 = vadd.f32 0.0, %v2471
        %v2473 = vpop.f32.mrf.mxu0
        %2474 = vmatprep.mubr.f32.mxu0 0.0
        %2475 = vmatmul.mubr.f32.gmra.mxu0 %v2271
        %v2476 = vpop.f32.mrf.mxu0
        %v2477 = vadd.f32 0.0, %v2476
        %v2478 = vpop.f32.mrf.mxu0
        %2479 = vmatprep.mubr.f32.mxu0 0.0
        %2480 = vmatmul.mubr.f32.gmra.mxu0 %v2274
        %v2481 = vpop.f32.mrf.mxu0
        %v2482 = vadd.f32 0.0, %v2481
        %v2483 = vpop.f32.mrf.mxu0
        %2484 = vmatprep.mubr.f32.mxu0 0.0
        %2485 = vmatmul.mubr.f32.gmra.mxu0 %v2277
        %v2486 = vpop.f32.mrf.mxu0
        %v2487 = vadd.f32 0.0, %v2486
        %v2488 = vpop.f32.mrf.mxu0
        %2489 = vmatprep.mubr.f32.mxu0 0.0
        %2490 = vmatmul.mubr.f32.gmra.mxu0 %v2280
        %v2491 = vpop.f32.mrf.mxu0
        %v2492 = vadd.f32 0.0, %v2491
        %v2493 = vpop.f32.mrf.mxu0
        %2494 = vmatprep.mubr.f32.mxu0 0.0
        %2495 = vmatmul.mubr.f32.gmra.mxu0 %v2283
        %v2496 = vpop.f32.mrf.mxu0
        %v2497 = vadd.f32 0.0, %v2496
        %v2498 = vpop.f32.mrf.mxu0
        %2499 = vmatprep.mubr.f32.mxu0 0.0
        %2500 = vmatmul.mubr.f32.gmra.mxu0 %v2286
        %v2501 = vpop.f32.mrf.mxu0
        %v2502 = vadd.f32 0.0, %v2501
        %v2503 = vpop.f32.mrf.mxu0
        %2504 = vmatprep.mubr.f32.mxu0 0.0
        %2505 = vmatmul.mubr.f32.gmra.mxu0 %v2289
        %v2506 = vpop.f32.mrf.mxu0
        %v2507 = vadd.f32 0.0, %v2506
        %v2508 = vpop.f32.mrf.mxu0
        %2509 = vmatprep.mubr.f32.mxu0 0.0
        %2510 = vmatmul.mubr.f32.gmra.mxu0 %v2292
        %v2511 = vpop.f32.mrf.mxu0
        %v2512 = vadd.f32 0.0, %v2511
        %v2513 = vpop.f32.mrf.mxu0
        %2514 = vmatprep.mubr.f32.mxu0 0.0
        %2515 = vmatmul.mubr.f32.gmra.mxu0 %v2295
        %v2516 = vpop.f32.mrf.mxu0
        %v2517 = vadd.f32 0.0, %v2516
        %v2518 = vpop.f32.mrf.mxu0
        %2519 = vmatprep.mubr.f32.mxu0 0.0
        %2520 = vmatmul.mubr.f32.gmra.mxu0 %v2298
        %v2521 = vpop.f32.mrf.mxu0
        %v2522 = vadd.f32 0.0, %v2521
        %v2523 = vpop.f32.mrf.mxu0
        %2524 = vmatprep.mubr.f32.mxu0 0.0
        %2525 = vmatmul.mubr.f32.gmra.mxu0 %v2301
        %v2526 = vpop.f32.mrf.mxu0
        %v2527 = vadd.f32 0.0, %v2526
        %v2528 = vpop.f32.mrf.mxu0
        %2529 = vmatprep.mubr.f32.mxu0 0.0
        %2530 = vmatmul.mubr.f32.gmra.mxu0 %v2304
        %v2531 = vpop.f32.mrf.mxu0
        %v2532 = vadd.f32 0.0, %v2531
        %v2533 = vpop.f32.mrf.mxu0
        %2534 = vmatprep.mubr.f32.mxu0 0.0
        %2535 = vmatmul.mubr.f32.gmra.mxu0 %v2307
        %v2536 = vpop.f32.mrf.mxu0
        %v2537 = vadd.f32 0.0, %v2536
        %v2538 = vpop.f32.mrf.mxu0
        %2539 = vmatprep.mubr.f32.mxu0 0.0
        %2540 = vmatmul.mubr.f32.gmra.mxu0 %v2310
        %v2541 = vpop.f32.mrf.mxu0
        %v2542 = vadd.f32 0.0, %v2541
        %v2543 = vpop.f32.mrf.mxu0
        %2544 = vmatprep.mubr.f32.mxu0 0.0
        %2545 = vmatmul.mubr.f32.gmra.mxu0 %v2313
        %v2546 = vpop.f32.mrf.mxu0
        %v2547 = vadd.f32 0.0, %v2546
        %v2548 = vpop.f32.mrf.mxu0
        %2549 = vmatprep.mubr.f32.mxu0 0.0
        %2550 = vmatmul.mubr.f32.gmra.mxu0 %v2316
        %v2551 = vpop.f32.mrf.mxu0
        %v2552 = vadd.f32 0.0, %v2551
        %v2553 = vpop.f32.mrf.mxu0
        %2554 = vmatprep.mubr.f32.mxu0 0.0
        %2555 = vmatmul.mubr.f32.gmra.mxu0 %v2319
        %v2556 = vpop.f32.mrf.mxu0
        %v2557 = vadd.f32 0.0, %v2556
        %v2558 = vpop.f32.mrf.mxu0
        %2559 = vmatprep.mubr.f32.mxu0 0.0
        %2560 = vmatmul.mubr.f32.gmra.mxu0 %v2322
        %v2561 = vpop.f32.mrf.mxu0
        %v2562 = vadd.f32 0.0, %v2561
        %v2563 = vpop.f32.mrf.mxu0
        %2564 = vmatprep.mubr.f32.mxu0 0.0
        %2565 = vmatmul.mubr.f32.gmra.mxu0 %v2325
        %v2566 = vpop.f32.mrf.mxu0
        %v2567 = vadd.f32 0.0, %v2566
        %v2568 = vpop.f32.mrf.mxu0
        %2569 = vmatprep.mubr.f32.mxu0 0.0
        %2570 = vmatmul.mubr.f32.gmra.mxu0 %v2328
        %v2571 = vpop.f32.mrf.mxu0
        %v2572 = vadd.f32 0.0, %v2571
        %v2573 = vpop.f32.mrf.mxu0
        %2574 = vmatprep.mubr.f32.mxu0 0.0
        %2575 = vmatmul.mubr.f32.gmra.mxu0 %v2331
        %v2576 = vpop.f32.mrf.mxu0
        %v2577 = vadd.f32 0.0, %v2576
        %v2578 = vpop.f32.mrf.mxu0
        %2579 = vmatprep.mubr.f32.mxu0 0.0
        %2580 = vmatmul.mubr.f32.gmra.mxu0 %v2334
        %v2581 = vpop.f32.mrf.mxu0
        %v2582 = vadd.f32 0.0, %v2581
        %v2583 = vpop.f32.mrf.mxu0
        %2584 = vmatprep.mubr.f32.mxu0 0.0
        %2585 = vmatmul.mubr.f32.gmra.mxu0 %v2337
        %v2586 = vpop.f32.mrf.mxu0
        %v2587 = vadd.f32 0.0, %v2586
        %v2588 = vpop.f32.mrf.mxu0
        %2589 = vmatprep.mubr.f32.mxu0 0.0
        %2590 = vmatmul.mubr.f32.gmra.mxu0 %v2340
        %v2591 = vpop.f32.mrf.mxu0
        %v2592 = vadd.f32 0.0, %v2591
        %v2593 = vpop.f32.mrf.mxu0
        %2594 = vmatprep.mubr.f32.mxu0 0.0
        %2595 = vmatmul.mubr.f32.gmra.mxu0 %v2343
        %v2596 = vpop.f32.mrf.mxu0
        %v2597 = vadd.f32 0.0, %v2596
        %v2598 = vpop.f32.mrf.mxu0
        %2599 = vmatprep.mubr.f32.mxu0 0.0
        %2600 = vmatmul.mubr.f32.gmra.mxu0 %v2346
        %v2601 = vpop.f32.mrf.mxu0
        %v2602 = vadd.f32 0.0, %v2601
        %v2603 = vpop.f32.mrf.mxu0
        %2604 = vmatprep.mubr.f32.mxu0 0.0
        %2605 = vmatmul.mubr.f32.gmra.mxu0 %v2349
        %v2606 = vpop.f32.mrf.mxu0
        %v2607 = vadd.f32 0.0, %v2606
        %v2608 = vpop.f32.mrf.mxu0
        %2609 = vmatprep.mubr.f32.mxu0 0.0
        %2610 = vmatmul.mubr.f32.gmra.mxu0 %v2352
        %v2611 = vpop.f32.mrf.mxu0
        %v2612 = vadd.f32 0.0, %v2611
        %v2613 = vpop.f32.mrf.mxu0
        %2614 = vmatprep.mubr.f32.mxu0 0.0
        %2615 = vmatmul.mubr.f32.gmra.mxu0 %v2355
        %v2616 = vpop.f32.mrf.mxu0
        %v2617 = vadd.f32 0.0, %v2616
        %v2618 = vpop.f32.mrf.mxu0
        %2619 = vmatprep.mubr.f32.mxu0 0.0
        %2620 = vmatmul.mubr.f32.gmra.mxu0 %v2358
        %v2621 = vpop.f32.mrf.mxu0
        %v2622 = vadd.f32 0.0, %v2621
        %v2623 = vpop.f32.mrf.mxu0
        %2624 = vdwg.mxu0
        %v2626 = vcombine.high %v2229, %v2229
        %v2628 = vunpack.c.l.s4 1966171168
        %v2629 = vunpack.c.0.s8 %v2628
        %v2630 = vlaneseq
        %v2631 = vshrl.u32 %v2630, 7
        %v2632 = vsub.s32 %v2629, %v2631
        %v2633 = vrot.slane %v2229, %v2632
        %v2635 = vunpack.c.l.s4 1966171168
        %v2636 = vunpack.c.0.s8 %v2635
        %v2637 = vlaneseq
        %v2638 = vshrl.u32 %v2637, 7
        %v2639 = vsub.s32 %v2636, %v2638
        %v2640 = vrot.slane %v2626, %v2639
        %v2641 = vcombine.high %v2633, %v2633
        %v2642 = vcombine.high %v2640, %v2640
        %v2644 = vunpack.c.l.s4 1966171168
        %v2645 = vunpack.c.0.s8 %v2644
        %v2646 = vlaneseq
        %v2647 = vshrl.u32 %v2646, 7
        %v2648 = vsub.s32 %v2645, %v2647
        %v2649 = vrot.slane %v2633, %v2648
        %v2651 = vunpack.c.l.s4 1966171168
        %v2652 = vunpack.c.0.s8 %v2651
        %v2653 = vlaneseq
        %v2654 = vshrl.u32 %v2653, 7
        %v2655 = vsub.s32 %v2652, %v2654
        %v2656 = vrot.slane %v2640, %v2655
        %v2658 = vunpack.c.l.s4 1966171168
        %v2659 = vunpack.c.0.s8 %v2658
        %v2660 = vlaneseq
        %v2661 = vshrl.u32 %v2660, 7
        %v2662 = vsub.s32 %v2659, %v2661
        %v2663 = vrot.slane %v2641, %v2662
        %v2665 = vunpack.c.l.s4 1966171168
        %v2666 = vunpack.c.0.s8 %v2665
        %v2667 = vlaneseq
        %v2668 = vshrl.u32 %v2667, 7
        %v2669 = vsub.s32 %v2666, %v2668
        %v2670 = vrot.slane %v2642, %v2669
        %v2671 = vcombine.high %v2649, %v2649
        %v2672 = vcombine.high %v2656, %v2656
        %v2673 = vcombine.high %v2663, %v2663
        %v2674 = vcombine.high %v2670, %v2670
        %v2675 = vlaneseq
        %v2676 = vshrl.u32 %v2675, 7
        %v2677 = vsub.s32 0, %v2676
        %v2678 = vrot.slane %v2649, %v2677
        %v2679 = vlaneseq
        %v2680 = vshrl.u32 %v2679, 7
        %v2681 = vsub.s32 0, %v2680
        %v2682 = vrot.slane %v2663, %v2681
        %v2683 = vlaneseq
        %v2684 = vshrl.u32 %v2683, 7
        %v2685 = vsub.s32 0, %v2684
        %v2686 = vrot.slane %v2671, %v2685
        %v2687 = vlaneseq
        %v2688 = vshrl.u32 %v2687, 7
        %v2689 = vsub.s32 0, %v2688
        %v2690 = vrot.slane %v2673, %v2689
        %v2691 = vlaneseq
        %v2692 = vshrl.u32 %v2691, 7
        %v2693 = vsub.s32 0, %v2692
        %v2694 = vrot.slane %v2656, %v2693
        %v2695 = vlaneseq
        %v2696 = vshrl.u32 %v2695, 7
        %v2697 = vsub.s32 0, %v2696
        %v2698 = vrot.slane %v2670, %v2697
        %v2699 = vlaneseq
        %v2700 = vshrl.u32 %v2699, 7
        %v2701 = vsub.s32 0, %v2700
        %v2702 = vrot.slane %v2672, %v2701
        %v2703 = vlaneseq
        %v2704 = vshrl.u32 %v2703, 7
        %v2705 = vsub.s32 0, %v2704
        %v2706 = vrot.slane %v2674, %v2705
        %v2715 = vadd.f32 %v2427, %v2678
        %v2716 = vadd.f32 %v2432, %v2678
        %v2717 = vadd.f32 %v2437, %v2678
        %v2718 = vadd.f32 %v2442, %v2678
        %v2719 = vadd.f32 %v2447, %v2678
        %v2720 = vadd.f32 %v2452, %v2682
        %v2721 = vadd.f32 %v2457, %v2682
        %v2722 = vadd.f32 %v2462, %v2682
        %v2723 = vadd.f32 %v2467, %v2682
        %v2724 = vadd.f32 %v2472, %v2682
        %v2725 = vadd.f32 %v2477, %v2686
        %v2726 = vadd.f32 %v2482, %v2686
        %v2727 = vadd.f32 %v2487, %v2686
        %v2728 = vadd.f32 %v2492, %v2686
        %v2729 = vadd.f32 %v2497, %v2686
        %v2730 = vadd.f32 %v2502, %v2690
        %v2731 = vadd.f32 %v2507, %v2690
        %v2732 = vadd.f32 %v2512, %v2690
        %v2733 = vadd.f32 %v2517, %v2690
        %v2734 = vadd.f32 %v2522, %v2690
        %v2735 = vadd.f32 %v2527, %v2694
        %v2736 = vadd.f32 %v2532, %v2694
        %v2737 = vadd.f32 %v2537, %v2694
        %v2738 = vadd.f32 %v2542, %v2694
        %v2739 = vadd.f32 %v2547, %v2694
        %v2740 = vadd.f32 %v2552, %v2698
        %v2741 = vadd.f32 %v2557, %v2698
        %v2742 = vadd.f32 %v2562, %v2698
        %v2743 = vadd.f32 %v2567, %v2698
        %v2744 = vadd.f32 %v2572, %v2698
        %v2745 = vadd.f32 %v2577, %v2702
        %v2746 = vadd.f32 %v2582, %v2702
        %v2747 = vadd.f32 %v2587, %v2702
        %v2748 = vadd.f32 %v2592, %v2702
        %v2749 = vadd.f32 %v2597, %v2702
        %v2750 = vadd.f32 %v2602, %v2706
        %v2751 = vadd.f32 %v2607, %v2706
        %v2752 = vadd.f32 %v2612, %v2706
        %v2753 = vadd.f32 %v2617, %v2706
        %v2754 = vadd.f32 %v2622, %v2706
        %v2755 = vmul.f32 %v577, %v2715
        %v2756 = vmul.f32 %v578, %v2716
        %v2757 = vmul.f32 %v579, %v2717
        %v2758 = vmul.f32 %v580, %v2718
        %v2759 = vmul.f32 %v581, %v2719
        %v2760 = vmul.f32 %v582, %v2720
        %v2761 = vmul.f32 %v583, %v2721
        %v2762 = vmul.f32 %v584, %v2722
        %v2763 = vmul.f32 %v585, %v2723
        %v2764 = vmul.f32 %v586, %v2724
        %v2765 = vmul.f32 %v587, %v2725
        %v2766 = vmul.f32 %v588, %v2726
        %v2767 = vmul.f32 %v589, %v2727
        %v2768 = vmul.f32 %v590, %v2728
        %v2769 = vmul.f32 %v591, %v2729
        %v2770 = vmul.f32 %v592, %v2730
        %v2771 = vmul.f32 %v593, %v2731
        %v2772 = vmul.f32 %v594, %v2732
        %v2773 = vmul.f32 %v595, %v2733
        %v2774 = vmul.f32 %v596, %v2734
        %v2775 = vmul.f32 %v597, %v2735
        %v2776 = vmul.f32 %v598, %v2736
        %v2777 = vmul.f32 %v599, %v2737
        %v2778 = vmul.f32 %v600, %v2738
        %v2779 = vmul.f32 %v601, %v2739
        %v2780 = vmul.f32 %v602, %v2740
        %v2781 = vmul.f32 %v603, %v2741
        %v2782 = vmul.f32 %v604, %v2742
        %v2783 = vmul.f32 %v605, %v2743
        %v2784 = vmul.f32 %v606, %v2744
        %v2785 = vmul.f32 %v607, %v2745
        %v2786 = vmul.f32 %v608, %v2746
        %v2787 = vmul.f32 %v609, %v2747
        %v2788 = vmul.f32 %v610, %v2748
        %v2789 = vmul.f32 %v611, %v2749
        %v2790 = vmul.f32 %v612, %v2750
        %v2791 = vmul.f32 %v613, %v2751
        %v2792 = vmul.f32 %v614, %v2752
        %v2793 = vmul.f32 %v615, %v2753
        %v2794 = vmul.f32 %v616, %v2754
        %v2795 = vld [vmem:[%s8] sm:$0x1]
        %v2797 = vlaneseq
        %v2798 = vshrl.u32 %v2797, 7
        %v2799 = vsub.s32 0, %v2798
        %v2800 = vrot.slane %v2795, %v2799
        %v2802 = vadd.f32 %v2755, %v2800
        %v2803 = vadd.f32 %v2756, %v2800
        %v2804 = vadd.f32 %v2757, %v2800
        %v2805 = vadd.f32 %v2758, %v2800
        %v2806 = vadd.f32 %v2759, %v2800
        %v2807 = vadd.f32 %v2760, %v2800
        %v2808 = vadd.f32 %v2761, %v2800
        %v2809 = vadd.f32 %v2762, %v2800
        %v2810 = vadd.f32 %v2763, %v2800
        %v2811 = vadd.f32 %v2764, %v2800
        %v2812 = vadd.f32 %v2765, %v2800
        %v2813 = vadd.f32 %v2766, %v2800
        %v2814 = vadd.f32 %v2767, %v2800
        %v2815 = vadd.f32 %v2768, %v2800
        %v2816 = vadd.f32 %v2769, %v2800
        %v2817 = vadd.f32 %v2770, %v2800
        %v2818 = vadd.f32 %v2771, %v2800
        %v2819 = vadd.f32 %v2772, %v2800
        %v2820 = vadd.f32 %v2773, %v2800
        %v2821 = vadd.f32 %v2774, %v2800
        %v2822 = vadd.f32 %v2775, %v2800
        %v2823 = vadd.f32 %v2776, %v2800
        %v2824 = vadd.f32 %v2777, %v2800
        %v2825 = vadd.f32 %v2778, %v2800
        %v2826 = vadd.f32 %v2779, %v2800
        %v2827 = vadd.f32 %v2780, %v2800
        %v2828 = vadd.f32 %v2781, %v2800
        %v2829 = vadd.f32 %v2782, %v2800
        %v2830 = vadd.f32 %v2783, %v2800
        %v2831 = vadd.f32 %v2784, %v2800
        %v2832 = vadd.f32 %v2785, %v2800
        %v2833 = vadd.f32 %v2786, %v2800
        %v2834 = vadd.f32 %v2787, %v2800
        %v2835 = vadd.f32 %v2788, %v2800
        %v2836 = vadd.f32 %v2789, %v2800
        %v2837 = vadd.f32 %v2790, %v2800
        %v2838 = vadd.f32 %v2791, %v2800
        %v2839 = vadd.f32 %v2792, %v2800
        %v2840 = vadd.f32 %v2793, %v2800
        %v2841 = vadd.f32 %v2794, %v2800
        %v2842 = vmax.f32 %v2802, 0.0
        %v2843 = vmax.f32 %v2803, 0.0
        %v2844 = vmax.f32 %v2804, 0.0
        %v2845 = vmax.f32 %v2805, 0.0
        %v2846 = vmax.f32 %v2806, 0.0
        %v2847 = vmax.f32 %v2807, 0.0
        %v2848 = vmax.f32 %v2808, 0.0
        %v2849 = vmax.f32 %v2809, 0.0
        %v2850 = vmax.f32 %v2810, 0.0
        %v2851 = vmax.f32 %v2811, 0.0
        %v2852 = vmax.f32 %v2812, 0.0
        %v2853 = vmax.f32 %v2813, 0.0
        %v2854 = vmax.f32 %v2814, 0.0
        %v2855 = vmax.f32 %v2815, 0.0
        %v2856 = vmax.f32 %v2816, 0.0
        %v2857 = vmax.f32 %v2817, 0.0
        %v2858 = vmax.f32 %v2818, 0.0
        %v2859 = vmax.f32 %v2819, 0.0
        %v2860 = vmax.f32 %v2820, 0.0
        %v2861 = vmax.f32 %v2821, 0.0
        %v2862 = vmax.f32 %v2822, 0.0
        %v2863 = vmax.f32 %v2823, 0.0
        %v2864 = vmax.f32 %v2824, 0.0
        %v2865 = vmax.f32 %v2825, 0.0
        %v2866 = vmax.f32 %v2826, 0.0
        %v2867 = vmax.f32 %v2827, 0.0
        %v2868 = vmax.f32 %v2828, 0.0
        %v2869 = vmax.f32 %v2829, 0.0
        %v2870 = vmax.f32 %v2830, 0.0
        %v2871 = vmax.f32 %v2831, 0.0
        %v2872 = vmax.f32 %v2832, 0.0
        %v2873 = vmax.f32 %v2833, 0.0
        %v2874 = vmax.f32 %v2834, 0.0
        %v2875 = vmax.f32 %v2835, 0.0
        %v2876 = vmax.f32 %v2836, 0.0
        %v2877 = vmax.f32 %v2837, 0.0
        %v2878 = vmax.f32 %v2838, 0.0
        %v2879 = vmax.f32 %v2839, 0.0
        %v2880 = vmax.f32 %v2840, 0.0
        %v2881 = vmax.f32 %v2841, 0.0
        %v2882 = vsel %vm1070, %v2842, 0.0
        %v2883 = vsel %vm1071, %v2843, 0.0
        %v2884 = vsel %vm1072, %v2844, 0.0
        %v2885 = vsel %vm1073, %v2845, 0.0
        %v2886 = vsel %vm1074, %v2846, 0.0
        %v2887 = vsel %vm1070, %v2847, 0.0
        %v2888 = vsel %vm1071, %v2848, 0.0
        %v2889 = vsel %vm1072, %v2849, 0.0
        %v2890 = vsel %vm1073, %v2850, 0.0
        %v2891 = vsel %vm1074, %v2851, 0.0
        %v2892 = vsel %vm1070, %v2852, 0.0
        %v2893 = vsel %vm1071, %v2853, 0.0
        %v2894 = vsel %vm1072, %v2854, 0.0
        %v2895 = vsel %vm1073, %v2855, 0.0
        %v2896 = vsel %vm1074, %v2856, 0.0
        %v2897 = vsel %vm1070, %v2857, 0.0
        %v2898 = vsel %vm1071, %v2858, 0.0
        %v2899 = vsel %vm1072, %v2859, 0.0
        %v2900 = vsel %vm1073, %v2860, 0.0
        %v2901 = vsel %vm1074, %v2861, 0.0
        %v2902 = vsel %vm1070, %v2862, 0.0
        %v2903 = vsel %vm1071, %v2863, 0.0
        %v2904 = vsel %vm1072, %v2864, 0.0
        %v2905 = vsel %vm1073, %v2865, 0.0
        %v2906 = vsel %vm1074, %v2866, 0.0
        %v2907 = vsel %vm1070, %v2867, 0.0
        %v2908 = vsel %vm1071, %v2868, 0.0
        %v2909 = vsel %vm1072, %v2869, 0.0
        %v2910 = vsel %vm1073, %v2870, 0.0
        %v2911 = vsel %vm1074, %v2871, 0.0
        %v2912 = vsel %vm1070, %v2872, 0.0
        %v2913 = vsel %vm1071, %v2873, 0.0
        %v2914 = vsel %vm1072, %v2874, 0.0
        %v2915 = vsel %vm1073, %v2875, 0.0
        %v2916 = vsel %vm1074, %v2876, 0.0
        %v2917 = vsel %vm1070, %v2877, 0.0
        %v2918 = vsel %vm1071, %v2878, 0.0
        %v2919 = vsel %vm1072, %v2879, 0.0
        %v2920 = vsel %vm1073, %v2880, 0.0
        %v2921 = vsel %vm1074, %v2881, 0.0
        %v2922 = vmax.f32 %v2882, %v2883
        %v2923 = vmax.f32 %v2922, %v2884
        %v2924 = vmax.f32 %v2923, %v2885
        %v2925 = vmax.f32 %v2924, %v2886
        %v2926 = vrot.slane %v2925, 4
        %v2927 = vmax.f32 %v2925, %v2926
        %v2928 = vrot.slane %v2927, 2
        %v2929 = vmax.f32 %v2927, %v2928
        %v2930 = vrot.slane %v2929, 1
        %v2931 = vmax.f32 %v2929, %v2930
        %v2932 = vmax.f32 %v2887, %v2888
        %v2933 = vmax.f32 %v2932, %v2889
        %v2934 = vmax.f32 %v2933, %v2890
        %v2935 = vmax.f32 %v2934, %v2891
        %v2936 = vrot.slane %v2935, 4
        %v2937 = vmax.f32 %v2935, %v2936
        %v2938 = vrot.slane %v2937, 2
        %v2939 = vmax.f32 %v2937, %v2938
        %v2940 = vrot.slane %v2939, 1
        %v2941 = vmax.f32 %v2939, %v2940
        %v2942 = vmax.f32 %v2892, %v2893
        %v2943 = vmax.f32 %v2942, %v2894
        %v2944 = vmax.f32 %v2943, %v2895
        %v2945 = vmax.f32 %v2944, %v2896
        %v2946 = vrot.slane %v2945, 4
        %v2947 = vmax.f32 %v2945, %v2946
        %v2948 = vrot.slane %v2947, 2
        %v2949 = vmax.f32 %v2947, %v2948
        %v2950 = vrot.slane %v2949, 1
        %v2951 = vmax.f32 %v2949, %v2950
        %v2952 = vmax.f32 %v2897, %v2898
        %v2953 = vmax.f32 %v2952, %v2899
        %v2954 = vmax.f32 %v2953, %v2900
        %v2955 = vmax.f32 %v2954, %v2901
        %v2956 = vrot.slane %v2955, 4
        %v2957 = vmax.f32 %v2955, %v2956
        %v2958 = vrot.slane %v2957, 2
        %v2959 = vmax.f32 %v2957, %v2958
        %v2960 = vrot.slane %v2959, 1
        %v2961 = vmax.f32 %v2959, %v2960
        %v2962 = vmax.f32 %v2902, %v2903
        %v2963 = vmax.f32 %v2962, %v2904
        %v2964 = vmax.f32 %v2963, %v2905
        %v2965 = vmax.f32 %v2964, %v2906
        %v2966 = vrot.slane %v2965, 4
        %v2967 = vmax.f32 %v2965, %v2966
        %v2968 = vrot.slane %v2967, 2
        %v2969 = vmax.f32 %v2967, %v2968
        %v2970 = vrot.slane %v2969, 1
        %v2971 = vmax.f32 %v2969, %v2970
        %v2972 = vmax.f32 %v2907, %v2908
        %v2973 = vmax.f32 %v2972, %v2909
        %v2974 = vmax.f32 %v2973, %v2910
        %v2975 = vmax.f32 %v2974, %v2911
        %v2976 = vrot.slane %v2975, 4
        %v2977 = vmax.f32 %v2975, %v2976
        %v2978 = vrot.slane %v2977, 2
        %v2979 = vmax.f32 %v2977, %v2978
        %v2980 = vrot.slane %v2979, 1
        %v2981 = vmax.f32 %v2979, %v2980
        %v2982 = vmax.f32 %v2912, %v2913
        %v2983 = vmax.f32 %v2982, %v2914
        %v2984 = vmax.f32 %v2983, %v2915
        %v2985 = vmax.f32 %v2984, %v2916
        %v2986 = vrot.slane %v2985, 4
        %v2987 = vmax.f32 %v2985, %v2986
        %v2988 = vrot.slane %v2987, 2
        %v2989 = vmax.f32 %v2987, %v2988
        %v2990 = vrot.slane %v2989, 1
        %v2991 = vmax.f32 %v2989, %v2990
        %v2992 = vmax.f32 %v2917, %v2918
        %v2993 = vmax.f32 %v2992, %v2919
        %v2994 = vmax.f32 %v2993, %v2920
        %v2995 = vmax.f32 %v2994, %v2921
        %v2996 = vrot.slane %v2995, 4
        %v2997 = vmax.f32 %v2995, %v2996
        %v2998 = vrot.slane %v2997, 2
        %v2999 = vmax.f32 %v2997, %v2998
        %v3000 = vrot.slane %v2999, 1
        %v3001 = vmax.f32 %v2999, %v3000
        %v3010 = vsel %vm1246, %v2941, %v2931
        %v3011 = vsel %vm1248, %v2951, %v3010
        %v3012 = vsel %vm1250, %v2961, %v3011
        %v3013 = vsel %vm1252, %v2971, %v3012
        %v3014 = vsel %vm1254, %v2981, %v3013
        %v3015 = vsel %vm1256, %v2991, %v3014
        %v3016 = vsel %vm1258, %v3001, %v3015
        %3018 = vst [vmem:[%s328] sm:$0xff] %v3016
        %s3019 = sand.u32 %s225, 1
        %s3020 = scalar_lea.sflag [#allocation3], %s3019
        %s3021 = sand.u32 %s225, 1
        %s3022 = smul.addr %s3021, 8
        %s3023 = scalar_lea.vmem [#allocation2], %s3022
        // Predicated region
        $region57: #{tpu_custom_call.1} parent=55 // pred_check
          %p3024 = pneg %p235
        $region58: #{tpu_custom_call.1} parent=55 // pred_check_branch
          %3026 = sbr.rel (%p3024) target = $region60
        $region59: #{tpu_custom_call.1} parent=55 // pred_region
          %s3028 = ssub.s32 128, 128
          %3029 = vsyncadd %s3020, %s3028
          %s3030 = smul.addr %s23, 128
          %s3031 = scalar_lea.hbm %s9, %s3030
          %s3033 = sshll.u32 %s3023, 4
          %s3034 = int_to_ptr.vmem [resolvable:$true] %s3033
          %3036 = dma.vmem_to_hbm [thread:$0]  %s3034, 128, %s3031, %s3020
        $region60: #{tpu_custom_call.1} parent=55 // pred_fallthru
          _
      $region56: #{tpu_custom_call.1} parent=5 // pred_fallthru
        _
      %p3037 = scmp.le.s32.totalorder 2, %s18
      // Predicated region
      $region61: #{tpu_custom_call.1} parent=5 // pred_check
        %p3038 = pneg %p3037
      $region62: #{tpu_custom_call.1} parent=5 // pred_check_branch
        %3040 = sbr.rel (%p3038) target = $region64
      $region63: #{tpu_custom_call.1} parent=5 // pred_region
        %s3041 = ssub.s32 %s18, 2
        // Predicated region
        $region65: #{tpu_custom_call.1} parent=63 // pred_check
          %p3042 = pneg %p241
        $region66: #{tpu_custom_call.1} parent=63 // pred_check_branch
          %3044 = sbr.rel (%p3042) target = $region68
        $region67: #{tpu_custom_call.1} parent=63 // pred_region
          %s3045 = sand.u32 %s226, 1
          %s3046 = scalar_lea.sflag [#allocation3], %s3045
          %s3047 = sand.u32 %s226, 1
          %s3048 = smul.addr %s3047, 8
          %s3049 = scalar_lea.vmem [#allocation2], %s3048
          %3050 = dma.done %s3046, 128
        $region68: #{tpu_custom_call.1} parent=63 // pred_fallthru
          _
      $region64: #{tpu_custom_call.1} parent=5 // pred_fallthru
        _
    $region6: #{tpu_custom_call.1} parent=1 // loop_footer
      %s22 = sadd.s32 1, %s18
    $region7: #{tpu_custom_call.1} parent=1 // loop_footer_branch
      %17 = sbr.rel target = $region3
    $region8: #{tpu_custom_call.1} parent=1 // loop_exit
      _
    %3051 = vsyncpa [#allocation3], 1
    %s3052 = scalar_lea.sflag [#allocation3], 1
    %3053 = vsyncpa %s3052, 1

</llo_original>
